<compile_context>
chip_gen: v5e
topology: v5e:2x2
jax: 0.10.0
libtpu: 0.0.40
codegen_flags: <defaults>
</compile_context>

<pallas_src>
import jax
import jax.numpy as jnp
from jax import lax
from jax.experimental import pallas as pl
from jax.experimental.pallas import tpu as pltpu


def _make_kernel(n_heads, head_dim):
    H, hd = n_heads, head_dim

    def kernel(
        x_ref,       # (1, S, D)    f32
        wqkv_ref,    # (D, 3D)      bf16  [q|k|v] columns, scale folded into q
        bqkv_ref,    # (1, 3D)      f32   scale folded into q part
        wo_ref,      # (D, D)       bf16  out-proj, pre-transposed
        bo_ref,      # (1, D)       f32
        g1_ref,      # (1, D)       f32
        beta1_ref,   # (1, D)       f32
        w1_ref,      # (D, d_mlp)   bf16  pre-transposed
        b1_ref,      # (1, d_mlp)   f32
        w2_ref,      # (d_mlp, D)   bf16  pre-transposed
        b2_ref,      # (1, D)       f32
        g2_ref,      # (1, D)       f32
        beta2_ref,   # (1, D)       f32
        o_ref,       # (1, S, D)
    ):
        eps = 1e-5
        S = x_ref.shape[1]
        D = x_ref.shape[2]

        x32 = x_ref[0].astype(jnp.float32)        # (S, D) residual / LN path
        x_bf = x_ref[0].astype(jnp.bfloat16)

        # --- fused QKV projection: one wide MXU matmul, f32 accumulation ---
        qkv = jnp.dot(x_bf, wqkv_ref[...], preferred_element_type=jnp.float32)
        qkv = (qkv + bqkv_ref[...]).astype(jnp.bfloat16)       # (S, 3D) bf16

        # head-major relayout (layout plumbing only; tiny static slices)
        def to_heads(part):                                    # (S, D) -> (H, S, hd)
            return jnp.stack([part[:, h * hd:(h + 1) * hd] for h in range(H)], axis=0)

        q = to_heads(qkv[:, 0 * D:1 * D])                      # scale already folded in
        k = to_heads(qkv[:, 1 * D:2 * D])
        v = to_heads(qkv[:, 2 * D:3 * D])

        # --- causal attention, all heads batched ---
        s = jnp.einsum("hqd,hkd->hqk", q, k,
                       preferred_element_type=jnp.float32)     # (H, S, S) f32
        row = lax.broadcasted_iota(jnp.int32, (S, S), 0)
        col = lax.broadcasted_iota(jnp.int32, (S, S), 1)
        s = jnp.where((col > row)[None, :, :], jnp.float32(-1e30), s)

        # numerically-stable softmax in f32; approx reciprocal -> EUP slot
        m = jnp.max(s, axis=-1, keepdims=True)
        p = jnp.exp(s - m)
        p = p * pl.reciprocal(jnp.sum(p, axis=-1, keepdims=True), approx=True)

        attn = jnp.einsum("hqk,hkd->hqd", p.astype(jnp.bfloat16), v,
                          preferred_element_type=jnp.float32)  # (H, S, hd)
        attn_bf = attn.astype(jnp.bfloat16)

        # --- out-projection: head merge folded into one full-depth matmul ---
        attn_flat = jnp.concatenate([attn_bf[h] for h in range(H)], axis=-1)  # (S, D)
        attn_out = jnp.dot(attn_flat, wo_ref[...],
                           preferred_element_type=jnp.float32) + bo_ref[...]

        # --- residual + LayerNorm 1 (one-pass stats, f32) ---
        res1 = x32 + attn_out
        mu1 = jnp.mean(res1, axis=-1, keepdims=True)
        var1 = jnp.mean(res1 * res1, axis=-1, keepdims=True) - mu1 * mu1
        n1 = (res1 - mu1) * lax.rsqrt(var1 + eps) * g1_ref[...] + beta1_ref[...]

        # --- MLP: linear1 -> ReLU -> linear2 (bf16 weights, f32 accumulation) ---
        h1 = jnp.dot(n1.astype(jnp.bfloat16), w1_ref[...],
                     preferred_element_type=jnp.float32) + b1_ref[...]
        h1 = jnp.maximum(h1, 0.0)
        ff = jnp.dot(h1.astype(jnp.bfloat16), w2_ref[...],
                     preferred_element_type=jnp.float32) + b2_ref[...]

        # --- residual + LayerNorm 2 ---
        res2 = n1 + ff
        mu2 = jnp.mean(res2, axis=-1, keepdims=True)
        var2 = jnp.mean(res2 * res2, axis=-1, keepdims=True) - mu2 * mu2
        n2 = (res2 - mu2) * lax.rsqrt(var2 + eps) * g2_ref[...] + beta2_ref[...]

        o_ref[0] = n2.astype(o_ref.dtype)

    return kernel


def prepare_params(params, *, n_heads):
    """One-time layout plumbing — call at parameter-load time, NOT per forward.

    Pre-transposes all weights, concatenates q/k/v into one (D, 3D) matrix,
    folds the 1/sqrt(hd) attention scale into the Q columns (and bias), and
    casts matmul weights to bf16."""
    D = params["w_out"].shape[0]
    H = n_heads
    assert D % H == 0
    hd = D // H
    d_mlp = params["w1"].shape[0]
    f32, bf16 = jnp.float32, jnp.bfloat16
    scale = 1.0 / (hd ** 0.5)

    # PyTorch in_proj_weight is (3D, D) with rows [q | k | v]; out = x @ W^T.
    col_scale = jnp.concatenate(
        [jnp.full((D,), scale, f32), jnp.ones((2 * D,), f32)])
    wqkv = (params["w_in"].astype(f32).T * col_scale[None, :]).astype(bf16)  # (D, 3D)
    bqkv = (params["b_in"].astype(f32).reshape(-1) * col_scale).reshape(1, 3 * D)

    return {
        "wqkv": wqkv,
        "bqkv": bqkv.astype(f32),
        "wo": params["w_out"].T.astype(bf16),            # (D, D)
        "bo": params["b_out"].reshape(1, D).astype(f32),
        "g1": params["g1"].reshape(1, D).astype(f32),
        "beta1": params["beta1"].reshape(1, D).astype(f32),
        "w1": params["w1"].T.astype(bf16),               # (D, d_mlp)
        "b1": params["b1"].reshape(1, d_mlp).astype(f32),
        "w2": params["w2"].T.astype(bf16),               # (d_mlp, D)
        "b2": params["b2"].reshape(1, D).astype(f32),
        "g2": params["g2"].reshape(1, D).astype(f32),
        "beta2": params["beta2"].reshape(1, D).astype(f32),
    }


def transformer_block(x, prepped, *, n_heads, single_buffer_weights=True):
    """x: (B, S, D) float32. prepped: output of prepare_params()."""
    B, S, D = x.shape
    assert D % n_heads == 0, "d_model must be divisible by n_heads"
    hd = D // n_heads
    d_mlp = prepped["w1"].shape[1]

    def wspec(shape):
        index_map = lambda b: (0,) * len(shape)
        if single_buffer_weights:
            # Constant index_map across the B grid: no need to double-buffer
            # these blocks (halves weight VMEM residency; critical on v7x).
            return pl.BlockSpec(shape, index_map, pipeline_mode=pl.Buffered(1))
        return pl.BlockSpec(shape, index_map)

    kernel = _make_kernel(n_heads, hd)

    return pl.pallas_call(
        kernel,
        out_shape=jax.ShapeDtypeStruct((B, S, D), x.dtype),
        grid_spec=pltpu.PrefetchScalarGridSpec(
            num_scalar_prefetch=0,
            # B=2 feeds both v7x TensorCores; if B could be 1, add a second
            # parallel axis (query blocks) so the megacore split has work.
            grid=(B,),
            in_specs=[
                pl.BlockSpec((1, S, D), lambda b: (b, 0, 0)),   # x
                wspec((D, 3 * D)),                              # Wqkv
                wspec((1, 3 * D)),                              # bqkv
                wspec((D, D)),                                  # W_out^T
                wspec((1, D)),                                  # b_out
                wspec((1, D)),                                  # ln1 gamma
                wspec((1, D)),                                  # ln1 beta
                wspec((D, d_mlp)),                              # W1^T
                wspec((1, d_mlp)),                              # b1
                wspec((d_mlp, D)),                              # W2^T
                wspec((1, D)),                                  # b2
                wspec((1, D)),                                  # ln2 gamma
                wspec((1, D)),                                  # ln2 beta
            ],
            out_specs=pl.BlockSpec((1, S, D), lambda b: (b, 0, 0)),
        ),
        compiler_params=pltpu.CompilerParams(
            dimension_semantics=("parallel",),
            # Tiny shapes here; re-derive per generation when scaling up
            # (v5e/v6e physical 128 MiB, v7x 64 MiB).
            vmem_limit_bytes=32 * 1024 * 1024,
        ),
    )(
        x,
        prepped["wqkv"], prepped["bqkv"], prepped["wo"], prepped["bo"],
        prepped["g1"], prepped["beta1"],
        prepped["w1"], prepped["b1"], prepped["w2"], prepped["b2"],
        prepped["g2"], prepped["beta2"],
    )


def transformer_block_ref(x, params, *, n_heads):
    """Pure-JAX f32 reference (mirrors the PyTorch module, dropout=0)."""
    B, S, D = x.shape
    hd = D // n_heads
    qkv = x @ params["w_in"].T + params["b_in"]
    q, k, v = jnp.split(qkv, 3, axis=-1)
    heads = lambda t: t.reshape(B, S, n_heads, hd).transpose(0, 2, 1, 3)
    q, k, v = heads(q), heads(k), heads(v)
    s = jnp.einsum("bhqd,bhkd->bhqk", q, k) / jnp.sqrt(hd)
    mask = jnp.triu(jnp.ones((S, S), bool), k=1)
    s = jnp.where(mask, -jnp.inf, s)
    p = jax.nn.softmax(s, axis=-1)
    a = jnp.einsum("bhqk,bhkd->bhqd", p, v).transpose(0, 2, 1, 3).reshape(B, S, D)
    attn_out = a @ params["w_out"].T + params["b_out"]

    def ln(z, g, b):
        mu = z.mean(-1, keepdims=True)
        var = ((z - mu) ** 2).mean(-1, keepdims=True)
        return (z - mu) * lax.rsqrt(var + 1e-5) * g + b

    x1 = ln(x + attn_out, params["g1"], params["beta1"])
    h = jnp.maximum(x1 @ params["w1"].T + params["b1"], 0.0)
    ff = h @ params["w2"].T + params["b2"]
    return ln(x1 + ff, params["g2"], params["beta2"])


def init_params(key, d_model, d_mlp):
    # Deterministic synthetic init; shapes match the PyTorch module's params.
    ks = jax.random.split(key, 8)
    s = 0.02
    return {
        "w_in":  jax.random.normal(ks[0], (3 * d_model, d_model), jnp.float32) * s,
        "b_in":  jax.random.normal(ks[1], (3 * d_model,), jnp.float32) * s,
        "w_out": jax.random.normal(ks[2], (d_model, d_model), jnp.float32) * s,
        "b_out": jax.random.normal(ks[3], (d_model,), jnp.float32) * s,
        "g1":    jnp.ones((d_model,), jnp.float32),
        "beta1": jnp.zeros((d_model,), jnp.float32),
        "w1":    jax.random.normal(ks[4], (d_mlp, d_model), jnp.float32) * s,
        "b1":    jax.random.normal(ks[5], (d_mlp,), jnp.float32) * s,
        "w2":    jax.random.normal(ks[6], (d_model, d_mlp), jnp.float32) * s,
        "b2":    jax.random.normal(ks[7], (d_model,), jnp.float32) * s,
        "g2":    jnp.ones((d_model,), jnp.float32),
        "beta2": jnp.zeros((d_model,), jnp.float32),
    }


if __name__ == "__main__":
    B, S, D, H, d_mlp = 2, 8, 32, 4, 64   # d_model=32, n_heads=4, d_mlp=64
    key = jax.random.PRNGKey(0)
    kx, kp = jax.random.split(key)
    x = jax.random.normal(kx, (B, S, D), jnp.float32)
    params = init_params(kp, D, d_mlp)
    prepped = prepare_params(params, n_heads=H)   # one-time layout plumbing

    try:
        out = jax.block_until_ready(
            transformer_block(x, prepped, n_heads=H, single_buffer_weights=True))
    except Exception:
        # Fallback if this JAX build rejects pipeline_mode=pl.Buffered(1):
        # identical math, default double-buffered weight blocks.
        out = jax.block_until_ready(
            transformer_block(x, prepped, n_heads=H, single_buffer_weights=False))

    assert out.shape == (B, S, D) and out.dtype == jnp.float32
    assert bool(jnp.isfinite(out).all())

    ref = transformer_block_ref(x, params, n_heads=H)
    max_err = float(jnp.max(jnp.abs(out - ref)))
    # bf16 matmul inputs + approx softmax reciprocal -> small expected drift.
    assert max_err < 0.1, f"max abs err vs f32 reference: {max_err}"
    print("KERNEL_OK")
</pallas_src>

<mosaic_0001>
module attributes {stable_mosaic.version = 11 : i64} {
  func.func @kernel(%arg0: i32, %arg1: memref<1x8x32xf32, #tpu.memory_space<vmem>>, %arg2: memref<32x96xbf16, #tpu.memory_space<vmem>>, %arg3: memref<1x96xf32, #tpu.memory_space<vmem>>, %arg4: memref<32x32xbf16, #tpu.memory_space<vmem>>, %arg5: memref<1x32xf32, #tpu.memory_space<vmem>>, %arg6: memref<1x32xf32, #tpu.memory_space<vmem>>, %arg7: memref<1x32xf32, #tpu.memory_space<vmem>>, %arg8: memref<32x64xbf16, #tpu.memory_space<vmem>>, %arg9: memref<1x64xf32, #tpu.memory_space<vmem>>, %arg10: memref<64x32xbf16, #tpu.memory_space<vmem>>, %arg11: memref<1x32xf32, #tpu.memory_space<vmem>>, %arg12: memref<1x32xf32, #tpu.memory_space<vmem>>, %arg13: memref<1x32xf32, #tpu.memory_space<vmem>>, %arg14: memref<1x8x32xf32, #tpu.memory_space<vmem>>) attributes {dimension_semantics = [#tpu.dimension_semantics<parallel>], iteration_bounds = array<i64: 2>, scalar_prefetch = 0 : i64, scratch_operands = 0 : i64, tpu.core_type = #tpu.core_type<tc>, window_params = [{transform_indices = @transform_0, window_bounds = array<i64: 1, 8, 32>}, {pipeline_mode = #tpu.pipeline_mode<synchronous>, transform_indices = @transform_1, window_bounds = array<i64: 32, 96>}, {pipeline_mode = #tpu.pipeline_mode<synchronous>, transform_indices = @transform_2, window_bounds = array<i64: 1, 96>}, {pipeline_mode = #tpu.pipeline_mode<synchronous>, transform_indices = @transform_3, window_bounds = array<i64: 32, 32>}, {pipeline_mode = #tpu.pipeline_mode<synchronous>, transform_indices = @transform_4, window_bounds = array<i64: 1, 32>}, {pipeline_mode = #tpu.pipeline_mode<synchronous>, transform_indices = @transform_5, window_bounds = array<i64: 1, 32>}, {pipeline_mode = #tpu.pipeline_mode<synchronous>, transform_indices = @transform_6, window_bounds = array<i64: 1, 32>}, {pipeline_mode = #tpu.pipeline_mode<synchronous>, transform_indices = @transform_7, window_bounds = array<i64: 32, 64>}, {pipeline_mode = #tpu.pipeline_mode<synchronous>, transform_indices = @transform_8, window_bounds = array<i64: 1, 64>}, {pipeline_mode = #tpu.pipeline_mode<synchronous>, transform_indices = @transform_9, window_bounds = array<i64: 64, 32>}, {pipeline_mode = #tpu.pipeline_mode<synchronous>, transform_indices = @transform_10, window_bounds = array<i64: 1, 32>}, {pipeline_mode = #tpu.pipeline_mode<synchronous>, transform_indices = @transform_11, window_bounds = array<i64: 1, 32>}, {pipeline_mode = #tpu.pipeline_mode<synchronous>, transform_indices = @transform_12, window_bounds = array<i64: 1, 32>}, {transform_indices = @transform_13, window_bounds = array<i64: 1, 8, 32>}]} {
    %c0 = arith.constant 0 : index
    %c0_0 = arith.constant 0 : index
    %c0_1 = arith.constant 0 : index
    %0 = vector.load %arg1[%c0, %c0_0, %c0_1] : memref<1x8x32xf32, #tpu.memory_space<vmem>>, vector<1x8x32xf32>
    %1 = vector.shape_cast %0 : vector<1x8x32xf32> to vector<8x32xf32>
    %c0_2 = arith.constant 0 : index
    %c0_3 = arith.constant 0 : index
    %c0_4 = arith.constant 0 : index
    %2 = vector.load %arg1[%c0_2, %c0_3, %c0_4] : memref<1x8x32xf32, #tpu.memory_space<vmem>>, vector<1x8x32xf32>
    %3 = vector.shape_cast %2 : vector<1x8x32xf32> to vector<8x32xf32>
    %4 = arith.truncf %3 : vector<8x32xf32> to vector<8x32xbf16>
    %c0_5 = arith.constant 0 : index
    %c0_6 = arith.constant 0 : index
    %5 = vector.load %arg2[%c0_5, %c0_6] : memref<32x96xbf16, #tpu.memory_space<vmem>>, vector<32x96xbf16>
    %cst = arith.constant dense<0.000000e+00> : vector<8x96xf32>
    %6 = tpu.matmul %4, %5, %cst {dimension_numbers = #tpu.dot_dimension_numbers<[1], [0], [0], [1], [0, 0, 1, 1], [], []>} : vector<8x32xbf16>, vector<32x96xbf16>, vector<8x96xf32> -> vector<8x96xf32>
    %c0_7 = arith.constant 0 : index
    %c0_8 = arith.constant 0 : index
    %7 = vector.load %arg3[%c0_7, %c0_8] : memref<1x96xf32, #tpu.memory_space<vmem>>, vector<1x96xf32>
    %8 = vector.broadcast %7 : vector<1x96xf32> to vector<8x96xf32>
    %9 = arith.addf %6, %8 : vector<8x96xf32>
    %10 = arith.truncf %9 : vector<8x96xf32> to vector<8x96xbf16>
    %11 = vector.extract_strided_slice %10 {offsets = [0, 0], sizes = [8, 32], strides = [1, 1]} : vector<8x96xbf16> to vector<8x32xbf16>
    %12 = vector.extract_strided_slice %11 {offsets = [0, 0], sizes = [8, 8], strides = [1, 1]} : vector<8x32xbf16> to vector<8x8xbf16>
    %13 = vector.extract_strided_slice %11 {offsets = [0, 8], sizes = [8, 8], strides = [1, 1]} : vector<8x32xbf16> to vector<8x8xbf16>
    %14 = vector.extract_strided_slice %11 {offsets = [0, 16], sizes = [8, 8], strides = [1, 1]} : vector<8x32xbf16> to vector<8x8xbf16>
    %15 = vector.extract_strided_slice %11 {offsets = [0, 24], sizes = [8, 8], strides = [1, 1]} : vector<8x32xbf16> to vector<8x8xbf16>
    %16 = vector.shape_cast %12 : vector<8x8xbf16> to vector<1x8x8xbf16>
    %17 = vector.shape_cast %13 : vector<8x8xbf16> to vector<1x8x8xbf16>
    %18 = vector.shape_cast %14 : vector<8x8xbf16> to vector<1x8x8xbf16>
    %19 = vector.shape_cast %15 : vector<8x8xbf16> to vector<1x8x8xbf16>
    %20 = tpu.concatenate %16, %17, %18, %19 in 0 : vector<1x8x8xbf16>, vector<1x8x8xbf16>, vector<1x8x8xbf16>, vector<1x8x8xbf16> -> vector<4x8x8xbf16>
    %21 = vector.extract_strided_slice %10 {offsets = [0, 32], sizes = [8, 32], strides = [1, 1]} : vector<8x96xbf16> to vector<8x32xbf16>
    %22 = vector.extract_strided_slice %21 {offsets = [0, 0], sizes = [8, 8], strides = [1, 1]} : vector<8x32xbf16> to vector<8x8xbf16>
    %23 = vector.extract_strided_slice %21 {offsets = [0, 8], sizes = [8, 8], strides = [1, 1]} : vector<8x32xbf16> to vector<8x8xbf16>
    %24 = vector.extract_strided_slice %21 {offsets = [0, 16], sizes = [8, 8], strides = [1, 1]} : vector<8x32xbf16> to vector<8x8xbf16>
    %25 = vector.extract_strided_slice %21 {offsets = [0, 24], sizes = [8, 8], strides = [1, 1]} : vector<8x32xbf16> to vector<8x8xbf16>
    %26 = vector.shape_cast %22 : vector<8x8xbf16> to vector<1x8x8xbf16>
    %27 = vector.shape_cast %23 : vector<8x8xbf16> to vector<1x8x8xbf16>
    %28 = vector.shape_cast %24 : vector<8x8xbf16> to vector<1x8x8xbf16>
    %29 = vector.shape_cast %25 : vector<8x8xbf16> to vector<1x8x8xbf16>
    %30 = tpu.concatenate %26, %27, %28, %29 in 0 : vector<1x8x8xbf16>, vector<1x8x8xbf16>, vector<1x8x8xbf16>, vector<1x8x8xbf16> -> vector<4x8x8xbf16>
    %31 = vector.extract_strided_slice %10 {offsets = [0, 64], sizes = [8, 32], strides = [1, 1]} : vector<8x96xbf16> to vector<8x32xbf16>
    %32 = vector.extract_strided_slice %31 {offsets = [0, 0], sizes = [8, 8], strides = [1, 1]} : vector<8x32xbf16> to vector<8x8xbf16>
    %33 = vector.extract_strided_slice %31 {offsets = [0, 8], sizes = [8, 8], strides = [1, 1]} : vector<8x32xbf16> to vector<8x8xbf16>
    %34 = vector.extract_strided_slice %31 {offsets = [0, 16], sizes = [8, 8], strides = [1, 1]} : vector<8x32xbf16> to vector<8x8xbf16>
    %35 = vector.extract_strided_slice %31 {offsets = [0, 24], sizes = [8, 8], strides = [1, 1]} : vector<8x32xbf16> to vector<8x8xbf16>
    %36 = vector.shape_cast %32 : vector<8x8xbf16> to vector<1x8x8xbf16>
    %37 = vector.shape_cast %33 : vector<8x8xbf16> to vector<1x8x8xbf16>
    %38 = vector.shape_cast %34 : vector<8x8xbf16> to vector<1x8x8xbf16>
    %39 = vector.shape_cast %35 : vector<8x8xbf16> to vector<1x8x8xbf16>
    %40 = tpu.concatenate %36, %37, %38, %39 in 0 : vector<1x8x8xbf16>, vector<1x8x8xbf16>, vector<1x8x8xbf16>, vector<1x8x8xbf16> -> vector<4x8x8xbf16>
    "tpu.trace_start"() <{level = 10 : i32, message = "hqd,hkd->hqk"}> : () -> ()
    %cst_9 = arith.constant dense<0.000000e+00> : vector<4x8x8xf32>
    %41 = tpu.matmul %20, %30, %cst_9 {dimension_numbers = #tpu.dot_dimension_numbers<[2], [2], [1], [1], [0, 0, 0, 1, 1, 1], [0], [0]>} : vector<4x8x8xbf16>, vector<4x8x8xbf16>, vector<4x8x8xf32> -> vector<4x8x8xf32>
    "tpu.trace_stop"() : () -> ()
    %42 = tpu.iota {dimensions = array<i32: 0>} : vector<8x8xi32>
    %43 = tpu.iota {dimensions = array<i32: 1>} : vector<8x8xi32>
    %44 = arith.cmpi sgt, %43, %42 : vector<8x8xi32>
    %45 = vector.shape_cast %44 : vector<8x8xi1> to vector<1x8x8xi1>
    %cst_10 = arith.constant -1.000000e+30 : f32
    %46 = vector.shape_cast %45 : vector<1x8x8xi1> to vector<1x8x8xi1>
    %47 = vector.broadcast %46 : vector<1x8x8xi1> to vector<4x8x8xi1>
    %48 = vector.broadcast %cst_10 : f32 to vector<4x8x8xf32>
    %49 = arith.select %47, %48, %41 : vector<4x8x8xi1>, vector<4x8x8xf32>
    %cst_11 = arith.constant dense<0xFF800000> : vector<4x8xf32>
    %50 = vector.multi_reduction <maximumf>, %49, %cst_11 [2] : vector<4x8x8xf32> to vector<4x8xf32>
    %51 = vector.shape_cast %50 : vector<4x8xf32> to vector<4x8x1xf32>
    %52 = vector.broadcast %51 : vector<4x8x1xf32> to vector<4x8x8xf32>
    %53 = arith.subf %49, %52 : vector<4x8x8xf32>
    %54 = math.exp %53 : vector<4x8x8xf32>
    %cst_12 = arith.constant dense<0.000000e+00> : vector<4x8xf32>
    %55 = vector.multi_reduction <add>, %54, %cst_12 [2] : vector<4x8x8xf32> to vector<4x8xf32>
    %56 = vector.shape_cast %55 : vector<4x8xf32> to vector<4x8x1xf32>
    %57 = tpu.reciprocal %56 {approx = true} : vector<4x8x1xf32> -> vector<4x8x1xf32>
    %58 = vector.broadcast %57 : vector<4x8x1xf32> to vector<4x8x8xf32>
    %59 = arith.mulf %54, %58 : vector<4x8x8xf32>
    %60 = arith.truncf %59 : vector<4x8x8xf32> to vector<4x8x8xbf16>
    "tpu.trace_start"() <{level = 10 : i32, message = "hqk,hkd->hqd"}> : () -> ()
    %cst_13 = arith.constant dense<0.000000e+00> : vector<4x8x8xf32>
    %61 = tpu.matmul %60, %40, %cst_13 {dimension_numbers = #tpu.dot_dimension_numbers<[2], [1], [1], [2], [0, 0, 0, 1, 1, 2], [0], [0]>} : vector<4x8x8xbf16>, vector<4x8x8xbf16>, vector<4x8x8xf32> -> vector<4x8x8xf32>
    "tpu.trace_stop"() : () -> ()
    %62 = arith.truncf %61 : vector<4x8x8xf32> to vector<4x8x8xbf16>
    %63 = vector.extract_strided_slice %62 {offsets = [0, 0, 0], sizes = [1, 8, 8], strides = [1, 1, 1]} : vector<4x8x8xbf16> to vector<1x8x8xbf16>
    %64 = vector.shape_cast %63 : vector<1x8x8xbf16> to vector<8x8xbf16>
    %65 = vector.extract_strided_slice %62 {offsets = [1, 0, 0], sizes = [1, 8, 8], strides = [1, 1, 1]} : vector<4x8x8xbf16> to vector<1x8x8xbf16>
    %66 = vector.shape_cast %65 : vector<1x8x8xbf16> to vector<8x8xbf16>
    %67 = vector.extract_strided_slice %62 {offsets = [2, 0, 0], sizes = [1, 8, 8], strides = [1, 1, 1]} : vector<4x8x8xbf16> to vector<1x8x8xbf16>
    %68 = vector.shape_cast %67 : vector<1x8x8xbf16> to vector<8x8xbf16>
    %69 = vector.extract_strided_slice %62 {offsets = [3, 0, 0], sizes = [1, 8, 8], strides = [1, 1, 1]} : vector<4x8x8xbf16> to vector<1x8x8xbf16>
    %70 = vector.shape_cast %69 : vector<1x8x8xbf16> to vector<8x8xbf16>
    %71 = tpu.concatenate %64, %66, %68, %70 in 1 : vector<8x8xbf16>, vector<8x8xbf16>, vector<8x8xbf16>, vector<8x8xbf16> -> vector<8x32xbf16>
    %c0_14 = arith.constant 0 : index
    %c0_15 = arith.constant 0 : index
    %72 = vector.load %arg4[%c0_14, %c0_15] : memref<32x32xbf16, #tpu.memory_space<vmem>>, vector<32x32xbf16>
    %cst_16 = arith.constant dense<0.000000e+00> : vector<8x32xf32>
    %73 = tpu.matmul %71, %72, %cst_16 {dimension_numbers = #tpu.dot_dimension_numbers<[1], [0], [0], [1], [0, 0, 1, 1], [], []>} : vector<8x32xbf16>, vector<32x32xbf16>, vector<8x32xf32> -> vector<8x32xf32>
    %c0_17 = arith.constant 0 : index
    %c0_18 = arith.constant 0 : index
    %74 = vector.load %arg5[%c0_17, %c0_18] : memref<1x32xf32, #tpu.memory_space<vmem>>, vector<1x32xf32>
    %75 = vector.broadcast %74 : vector<1x32xf32> to vector<8x32xf32>
    %76 = arith.addf %73, %75 : vector<8x32xf32>
    %77 = arith.addf %1, %76 : vector<8x32xf32>
    %cst_19 = arith.constant dense<0.000000e+00> : vector<8xf32>
    %78 = vector.multi_reduction <add>, %77, %cst_19 [1] : vector<8x32xf32> to vector<8xf32>
    %79 = vector.shape_cast %78 : vector<8xf32> to vector<8x1xf32>
    %cst_20 = arith.constant 3.200000e+01 : f32
    %80 = vector.broadcast %cst_20 : f32 to vector<8x1xf32>
    %81 = arith.divf %79, %80 : vector<8x1xf32>
    %82 = arith.mulf %77, %77 : vector<8x32xf32>
    %cst_21 = arith.constant dense<0.000000e+00> : vector<8xf32>
    %83 = vector.multi_reduction <add>, %82, %cst_21 [1] : vector<8x32xf32> to vector<8xf32>
    %84 = vector.shape_cast %83 : vector<8xf32> to vector<8x1xf32>
    %cst_22 = arith.constant 3.200000e+01 : f32
    %85 = vector.broadcast %cst_22 : f32 to vector<8x1xf32>
    %86 = arith.divf %84, %85 : vector<8x1xf32>
    %87 = arith.mulf %81, %81 : vector<8x1xf32>
    %88 = arith.subf %86, %87 : vector<8x1xf32>
    %89 = vector.broadcast %81 : vector<8x1xf32> to vector<8x32xf32>
    %90 = arith.subf %77, %89 : vector<8x32xf32>
    %cst_23 = arith.constant 9.99999974E-6 : f32
    %91 = vector.broadcast %cst_23 : f32 to vector<8x1xf32>
    %92 = arith.addf %88, %91 : vector<8x1xf32>
    %93 = math.rsqrt %92 : vector<8x1xf32>
    %94 = vector.broadcast %93 : vector<8x1xf32> to vector<8x32xf32>
    %95 = arith.mulf %90, %94 : vector<8x32xf32>
    %c0_24 = arith.constant 0 : index
    %c0_25 = arith.constant 0 : index
    %96 = vector.load %arg6[%c0_24, %c0_25] : memref<1x32xf32, #tpu.memory_space<vmem>>, vector<1x32xf32>
    %97 = vector.broadcast %96 : vector<1x32xf32> to vector<8x32xf32>
    %98 = arith.mulf %95, %97 : vector<8x32xf32>
    %c0_26 = arith.constant 0 : index
    %c0_27 = arith.constant 0 : index
    %99 = vector.load %arg7[%c0_26, %c0_27] : memref<1x32xf32, #tpu.memory_space<vmem>>, vector<1x32xf32>
    %100 = vector.broadcast %99 : vector<1x32xf32> to vector<8x32xf32>
    %101 = arith.addf %98, %100 : vector<8x32xf32>
    %102 = arith.truncf %101 : vector<8x32xf32> to vector<8x32xbf16>
    %c0_28 = arith.constant 0 : index
    %c0_29 = arith.constant 0 : index
    %103 = vector.load %arg8[%c0_28, %c0_29] : memref<32x64xbf16, #tpu.memory_space<vmem>>, vector<32x64xbf16>
    %cst_30 = arith.constant dense<0.000000e+00> : vector<8x64xf32>
    %104 = tpu.matmul %102, %103, %cst_30 {dimension_numbers = #tpu.dot_dimension_numbers<[1], [0], [0], [1], [0, 0, 1, 1], [], []>} : vector<8x32xbf16>, vector<32x64xbf16>, vector<8x64xf32> -> vector<8x64xf32>
    %c0_31 = arith.constant 0 : index
    %c0_32 = arith.constant 0 : index
    %105 = vector.load %arg9[%c0_31, %c0_32] : memref<1x64xf32, #tpu.memory_space<vmem>>, vector<1x64xf32>
    %106 = vector.broadcast %105 : vector<1x64xf32> to vector<8x64xf32>
    %107 = arith.addf %104, %106 : vector<8x64xf32>
    %cst_33 = arith.constant 0.000000e+00 : f32
    %108 = vector.broadcast %cst_33 : f32 to vector<8x64xf32>
    %109 = arith.maximumf %107, %108 : vector<8x64xf32>
    %110 = arith.truncf %109 : vector<8x64xf32> to vector<8x64xbf16>
    %c0_34 = arith.constant 0 : index
    %c0_35 = arith.constant 0 : index
    %111 = vector.load %arg10[%c0_34, %c0_35] : memref<64x32xbf16, #tpu.memory_space<vmem>>, vector<64x32xbf16>
    %cst_36 = arith.constant dense<0.000000e+00> : vector<8x32xf32>
    %112 = tpu.matmul %110, %111, %cst_36 {dimension_numbers = #tpu.dot_dimension_numbers<[1], [0], [0], [1], [0, 0, 1, 1], [], []>} : vector<8x64xbf16>, vector<64x32xbf16>, vector<8x32xf32> -> vector<8x32xf32>
    %c0_37 = arith.constant 0 : index
    %c0_38 = arith.constant 0 : index
    %113 = vector.load %arg11[%c0_37, %c0_38] : memref<1x32xf32, #tpu.memory_space<vmem>>, vector<1x32xf32>
    %114 = vector.broadcast %113 : vector<1x32xf32> to vector<8x32xf32>
    %115 = arith.addf %112, %114 : vector<8x32xf32>
    %116 = arith.addf %101, %115 : vector<8x32xf32>
    %cst_39 = arith.constant dense<0.000000e+00> : vector<8xf32>
    %117 = vector.multi_reduction <add>, %116, %cst_39 [1] : vector<8x32xf32> to vector<8xf32>
    %118 = vector.shape_cast %117 : vector<8xf32> to vector<8x1xf32>
    %cst_40 = arith.constant 3.200000e+01 : f32
    %119 = vector.broadcast %cst_40 : f32 to vector<8x1xf32>
    %120 = arith.divf %118, %119 : vector<8x1xf32>
    %121 = arith.mulf %116, %116 : vector<8x32xf32>
    %cst_41 = arith.constant dense<0.000000e+00> : vector<8xf32>
    %122 = vector.multi_reduction <add>, %121, %cst_41 [1] : vector<8x32xf32> to vector<8xf32>
    %123 = vector.shape_cast %122 : vector<8xf32> to vector<8x1xf32>
    %cst_42 = arith.constant 3.200000e+01 : f32
    %124 = vector.broadcast %cst_42 : f32 to vector<8x1xf32>
    %125 = arith.divf %123, %124 : vector<8x1xf32>
    %126 = arith.mulf %120, %120 : vector<8x1xf32>
    %127 = arith.subf %125, %126 : vector<8x1xf32>
    %128 = vector.broadcast %120 : vector<8x1xf32> to vector<8x32xf32>
    %129 = arith.subf %116, %128 : vector<8x32xf32>
    %cst_43 = arith.constant 9.99999974E-6 : f32
    %130 = vector.broadcast %cst_43 : f32 to vector<8x1xf32>
    %131 = arith.addf %127, %130 : vector<8x1xf32>
    %132 = math.rsqrt %131 : vector<8x1xf32>
    %133 = vector.broadcast %132 : vector<8x1xf32> to vector<8x32xf32>
    %134 = arith.mulf %129, %133 : vector<8x32xf32>
    %c0_44 = arith.constant 0 : index
    %c0_45 = arith.constant 0 : index
    %135 = vector.load %arg12[%c0_44, %c0_45] : memref<1x32xf32, #tpu.memory_space<vmem>>, vector<1x32xf32>
    %136 = vector.broadcast %135 : vector<1x32xf32> to vector<8x32xf32>
    %137 = arith.mulf %134, %136 : vector<8x32xf32>
    %c0_46 = arith.constant 0 : index
    %c0_47 = arith.constant 0 : index
    %138 = vector.load %arg13[%c0_46, %c0_47] : memref<1x32xf32, #tpu.memory_space<vmem>>, vector<1x32xf32>
    %139 = vector.broadcast %138 : vector<1x32xf32> to vector<8x32xf32>
    %140 = arith.addf %137, %139 : vector<8x32xf32>
    %c0_48 = arith.constant 0 : index
    %c0_49 = arith.constant 0 : index
    %c0_50 = arith.constant 0 : index
    %141 = vector.load %arg14[%c0_48, %c0_49, %c0_50] : memref<1x8x32xf32, #tpu.memory_space<vmem>>, vector<1x8x32xf32>
    %142 = vector.shape_cast %141 : vector<1x8x32xf32> to vector<8x32xf32>
    %143 = vector.shape_cast %140 : vector<8x32xf32> to vector<1x8x32xf32>
    tpu.vector_store %arg14[%c0_48, %c0_49, %c0_50], %143 {strides = array<i32>} : memref<1x8x32xf32, #tpu.memory_space<vmem>>, vector<1x8x32xf32>,
    return
  }
  func.func @transform_0(%arg0: i32) -> (i32, i32, i32) {
    %c0_i32 = arith.constant 0 : i32
    %c0_i32_0 = arith.constant 0 : i32
    %c0_i32_1 = arith.constant 0 : i32
    return %arg0, %c0_i32, %c0_i32_0 : i32, i32, i32
  }
  func.func @transform_1(%arg0: i32) -> (i32, i32) {
    %c0_i32 = arith.constant 0 : i32
    %c0_i32_0 = arith.constant 0 : i32
    %c0_i32_1 = arith.constant 0 : i32
    return %c0_i32, %c0_i32_0 : i32, i32
  }
  func.func @transform_2(%arg0: i32) -> (i32, i32) {
    %c0_i32 = arith.constant 0 : i32
    %c0_i32_0 = arith.constant 0 : i32
    %c0_i32_1 = arith.constant 0 : i32
    return %c0_i32, %c0_i32_0 : i32, i32
  }
  func.func @transform_3(%arg0: i32) -> (i32, i32) {
    %c0_i32 = arith.constant 0 : i32
    %c0_i32_0 = arith.constant 0 : i32
    %c0_i32_1 = arith.constant 0 : i32
    return %c0_i32, %c0_i32_0 : i32, i32
  }
  func.func @transform_4(%arg0: i32) -> (i32, i32) {
    %c0_i32 = arith.constant 0 : i32
    %c0_i32_0 = arith.constant 0 : i32
    %c0_i32_1 = arith.constant 0 : i32
    return %c0_i32, %c0_i32_0 : i32, i32
  }
  func.func @transform_5(%arg0: i32) -> (i32, i32) {
    %c0_i32 = arith.constant 0 : i32
    %c0_i32_0 = arith.constant 0 : i32
    %c0_i32_1 = arith.constant 0 : i32
    return %c0_i32, %c0_i32_0 : i32, i32
  }
  func.func @transform_6(%arg0: i32) -> (i32, i32) {
    %c0_i32 = arith.constant 0 : i32
    %c0_i32_0 = arith.constant 0 : i32
    %c0_i32_1 = arith.constant 0 : i32
    return %c0_i32, %c0_i32_0 : i32, i32
  }
  func.func @transform_7(%arg0: i32) -> (i32, i32) {
    %c0_i32 = arith.constant 0 : i32
    %c0_i32_0 = arith.constant 0 : i32
    %c0_i32_1 = arith.constant 0 : i32
    return %c0_i32, %c0_i32_0 : i32, i32
  }
  func.func @transform_8(%arg0: i32) -> (i32, i32) {
    %c0_i32 = arith.constant 0 : i32
    %c0_i32_0 = arith.constant 0 : i32
    %c0_i32_1 = arith.constant 0 : i32
    return %c0_i32, %c0_i32_0 : i32, i32
  }
  func.func @transform_9(%arg0: i32) -> (i32, i32) {
    %c0_i32 = arith.constant 0 : i32
    %c0_i32_0 = arith.constant 0 : i32
    %c0_i32_1 = arith.constant 0 : i32
    return %c0_i32, %c0_i32_0 : i32, i32
  }
  func.func @transform_10(%arg0: i32) -> (i32, i32) {
    %c0_i32 = arith.constant 0 : i32
    %c0_i32_0 = arith.constant 0 : i32
    %c0_i32_1 = arith.constant 0 : i32
    return %c0_i32, %c0_i32_0 : i32, i32
  }
  func.func @transform_11(%arg0: i32) -> (i32, i32) {
    %c0_i32 = arith.constant 0 : i32
    %c0_i32_0 = arith.constant 0 : i32
    %c0_i32_1 = arith.constant 0 : i32
    return %c0_i32, %c0_i32_0 : i32, i32
  }
  func.func @transform_12(%arg0: i32) -> (i32, i32) {
    %c0_i32 = arith.constant 0 : i32
    %c0_i32_0 = arith.constant 0 : i32
    %c0_i32_1 = arith.constant 0 : i32
    return %c0_i32, %c0_i32_0 : i32, i32
  }
  func.func @transform_13(%arg0: i32) -> (i32, i32, i32) {
    %c0_i32 = arith.constant 0 : i32
    %c0_i32_0 = arith.constant 0 : i32
    %c0_i32_1 = arith.constant 0 : i32
    return %arg0, %c0_i32, %c0_i32_0 : i32, i32, i32
  }
}

module attributes {stable_mosaic.version = 11 : i64} {
  func.func @kernel(%arg0: i32, %arg1: memref<1x8x32xf32, #tpu.memory_space<vmem>>, %arg2: memref<32x96xbf16, #tpu.memory_space<vmem>>, %arg3: memref<1x96xf32, #tpu.memory_space<vmem>>, %arg4: memref<32x32xbf16, #tpu.memory_space<vmem>>, %arg5: memref<1x32xf32, #tpu.memory_space<vmem>>, %arg6: memref<1x32xf32, #tpu.memory_space<vmem>>, %arg7: memref<1x32xf32, #tpu.memory_space<vmem>>, %arg8: memref<32x64xbf16, #tpu.memory_space<vmem>>, %arg9: memref<1x64xf32, #tpu.memory_space<vmem>>, %arg10: memref<64x32xbf16, #tpu.memory_space<vmem>>, %arg11: memref<1x32xf32, #tpu.memory_space<vmem>>, %arg12: memref<1x32xf32, #tpu.memory_space<vmem>>, %arg13: memref<1x32xf32, #tpu.memory_space<vmem>>, %arg14: memref<1x8x32xf32, #tpu.memory_space<vmem>>) attributes {dimension_semantics = [#tpu.dimension_semantics<parallel>], iteration_bounds = array<i64: 2>, scalar_prefetch = 0 : i64, scratch_operands = 0 : i64, tpu.core_type = #tpu.core_type<tc>, window_params = [{transform_indices = @transform_0, window_bounds = array<i64: 1, 8, 32>}, {pipeline_mode = #tpu.pipeline_mode<synchronous>, transform_indices = @transform_1, window_bounds = array<i64: 32, 96>}, {pipeline_mode = #tpu.pipeline_mode<synchronous>, transform_indices = @transform_2, window_bounds = array<i64: 1, 96>}, {pipeline_mode = #tpu.pipeline_mode<synchronous>, transform_indices = @transform_3, window_bounds = array<i64: 32, 32>}, {pipeline_mode = #tpu.pipeline_mode<synchronous>, transform_indices = @transform_4, window_bounds = array<i64: 1, 32>}, {pipeline_mode = #tpu.pipeline_mode<synchronous>, transform_indices = @transform_5, window_bounds = array<i64: 1, 32>}, {pipeline_mode = #tpu.pipeline_mode<synchronous>, transform_indices = @transform_6, window_bounds = array<i64: 1, 32>}, {pipeline_mode = #tpu.pipeline_mode<synchronous>, transform_indices = @transform_7, window_bounds = array<i64: 32, 64>}, {pipeline_mode = #tpu.pipeline_mode<synchronous>, transform_indices = @transform_8, window_bounds = array<i64: 1, 64>}, {pipeline_mode = #tpu.pipeline_mode<synchronous>, transform_indices = @transform_9, window_bounds = array<i64: 64, 32>}, {pipeline_mode = #tpu.pipeline_mode<synchronous>, transform_indices = @transform_10, window_bounds = array<i64: 1, 32>}, {pipeline_mode = #tpu.pipeline_mode<synchronous>, transform_indices = @transform_11, window_bounds = array<i64: 1, 32>}, {pipeline_mode = #tpu.pipeline_mode<synchronous>, transform_indices = @transform_12, window_bounds = array<i64: 1, 32>}, {transform_indices = @transform_13, window_bounds = array<i64: 1, 8, 32>}]} {
    %c0 = arith.constant 0 : index
    %c0_0 = arith.constant 0 : index
    %c0_1 = arith.constant 0 : index
    %0 = vector.load %arg1[%c0, %c0_0, %c0_1] : memref<1x8x32xf32, #tpu.memory_space<vmem>>, vector<1x8x32xf32>
    %1 = vector.shape_cast %0 : vector<1x8x32xf32> to vector<8x32xf32>
    %c0_2 = arith.constant 0 : index
    %c0_3 = arith.constant 0 : index
    %c0_4 = arith.constant 0 : index
    %2 = vector.load %arg1[%c0_2, %c0_3, %c0_4] : memref<1x8x32xf32, #tpu.memory_space<vmem>>, vector<1x8x32xf32>
    %3 = vector.shape_cast %2 : vector<1x8x32xf32> to vector<8x32xf32>
    %4 = arith.truncf %3 : vector<8x32xf32> to vector<8x32xbf16>
    %c0_5 = arith.constant 0 : index
    %c0_6 = arith.constant 0 : index
    %5 = vector.load %arg2[%c0_5, %c0_6] : memref<32x96xbf16, #tpu.memory_space<vmem>>, vector<32x96xbf16>
    %cst = arith.constant dense<0.000000e+00> : vector<8x96xf32>
    %6 = tpu.matmul %4, %5, %cst {dimension_numbers = #tpu.dot_dimension_numbers<[1], [0], [0], [1], [0, 0, 1, 1], [], []>} : vector<8x32xbf16>, vector<32x96xbf16>, vector<8x96xf32> -> vector<8x96xf32>
    %c0_7 = arith.constant 0 : index
    %c0_8 = arith.constant 0 : index
    %7 = vector.load %arg3[%c0_7, %c0_8] : memref<1x96xf32, #tpu.memory_space<vmem>>, vector<1x96xf32>
    %8 = vector.broadcast %7 : vector<1x96xf32> to vector<8x96xf32>
    %9 = arith.addf %6, %8 : vector<8x96xf32>
    %10 = arith.truncf %9 : vector<8x96xf32> to vector<8x96xbf16>
    %11 = vector.extract_strided_slice %10 {offsets = [0, 0], sizes = [8, 32], strides = [1, 1]} : vector<8x96xbf16> to vector<8x32xbf16>
    %12 = vector.extract_strided_slice %11 {offsets = [0, 0], sizes = [8, 8], strides = [1, 1]} : vector<8x32xbf16> to vector<8x8xbf16>
    %13 = vector.extract_strided_slice %11 {offsets = [0, 8], sizes = [8, 8], strides = [1, 1]} : vector<8x32xbf16> to vector<8x8xbf16>
    %14 = vector.extract_strided_slice %11 {offsets = [0, 16], sizes = [8, 8], strides = [1, 1]} : vector<8x32xbf16> to vector<8x8xbf16>
    %15 = vector.extract_strided_slice %11 {offsets = [0, 24], sizes = [8, 8], strides = [1, 1]} : vector<8x32xbf16> to vector<8x8xbf16>
    %16 = vector.shape_cast %12 : vector<8x8xbf16> to vector<1x8x8xbf16>
    %17 = vector.shape_cast %13 : vector<8x8xbf16> to vector<1x8x8xbf16>
    %18 = vector.shape_cast %14 : vector<8x8xbf16> to vector<1x8x8xbf16>
    %19 = vector.shape_cast %15 : vector<8x8xbf16> to vector<1x8x8xbf16>
    %20 = tpu.concatenate %16, %17, %18, %19 in 0 : vector<1x8x8xbf16>, vector<1x8x8xbf16>, vector<1x8x8xbf16>, vector<1x8x8xbf16> -> vector<4x8x8xbf16>
    %21 = vector.extract_strided_slice %10 {offsets = [0, 32], sizes = [8, 32], strides = [1, 1]} : vector<8x96xbf16> to vector<8x32xbf16>
    %22 = vector.extract_strided_slice %21 {offsets = [0, 0], sizes = [8, 8], strides = [1, 1]} : vector<8x32xbf16> to vector<8x8xbf16>
    %23 = vector.extract_strided_slice %21 {offsets = [0, 8], sizes = [8, 8], strides = [1, 1]} : vector<8x32xbf16> to vector<8x8xbf16>
    %24 = vector.extract_strided_slice %21 {offsets = [0, 16], sizes = [8, 8], strides = [1, 1]} : vector<8x32xbf16> to vector<8x8xbf16>
    %25 = vector.extract_strided_slice %21 {offsets = [0, 24], sizes = [8, 8], strides = [1, 1]} : vector<8x32xbf16> to vector<8x8xbf16>
    %26 = vector.shape_cast %22 : vector<8x8xbf16> to vector<1x8x8xbf16>
    %27 = vector.shape_cast %23 : vector<8x8xbf16> to vector<1x8x8xbf16>
    %28 = vector.shape_cast %24 : vector<8x8xbf16> to vector<1x8x8xbf16>
    %29 = vector.shape_cast %25 : vector<8x8xbf16> to vector<1x8x8xbf16>
    %30 = tpu.concatenate %26, %27, %28, %29 in 0 : vector<1x8x8xbf16>, vector<1x8x8xbf16>, vector<1x8x8xbf16>, vector<1x8x8xbf16> -> vector<4x8x8xbf16>
    %31 = vector.extract_strided_slice %10 {offsets = [0, 64], sizes = [8, 32], strides = [1, 1]} : vector<8x96xbf16> to vector<8x32xbf16>
    %32 = vector.extract_strided_slice %31 {offsets = [0, 0], sizes = [8, 8], strides = [1, 1]} : vector<8x32xbf16> to vector<8x8xbf16>
    %33 = vector.extract_strided_slice %31 {offsets = [0, 8], sizes = [8, 8], strides = [1, 1]} : vector<8x32xbf16> to vector<8x8xbf16>
    %34 = vector.extract_strided_slice %31 {offsets = [0, 16], sizes = [8, 8], strides = [1, 1]} : vector<8x32xbf16> to vector<8x8xbf16>
    %35 = vector.extract_strided_slice %31 {offsets = [0, 24], sizes = [8, 8], strides = [1, 1]} : vector<8x32xbf16> to vector<8x8xbf16>
    %36 = vector.shape_cast %32 : vector<8x8xbf16> to vector<1x8x8xbf16>
    %37 = vector.shape_cast %33 : vector<8x8xbf16> to vector<1x8x8xbf16>
    %38 = vector.shape_cast %34 : vector<8x8xbf16> to vector<1x8x8xbf16>
    %39 = vector.shape_cast %35 : vector<8x8xbf16> to vector<1x8x8xbf16>
    %40 = tpu.concatenate %36, %37, %38, %39 in 0 : vector<1x8x8xbf16>, vector<1x8x8xbf16>, vector<1x8x8xbf16>, vector<1x8x8xbf16> -> vector<4x8x8xbf16>
    "tpu.trace_start"() <{level = 10 : i32, message = "hqd,hkd->hqk"}> : () -> ()
    %cst_9 = arith.constant dense<0.000000e+00> : vector<4x8x8xf32>
    %41 = tpu.matmul %20, %30, %cst_9 {dimension_numbers = #tpu.dot_dimension_numbers<[2], [2], [1], [1], [0, 0, 0, 1, 1, 1], [0], [0]>} : vector<4x8x8xbf16>, vector<4x8x8xbf16>, vector<4x8x8xf32> -> vector<4x8x8xf32>
    "tpu.trace_stop"() : () -> ()
    %42 = tpu.iota {dimensions = array<i32: 0>} : vector<8x8xi32>
    %43 = tpu.iota {dimensions = array<i32: 1>} : vector<8x8xi32>
    %44 = arith.cmpi sgt, %43, %42 : vector<8x8xi32>
    %45 = vector.shape_cast %44 : vector<8x8xi1> to vector<1x8x8xi1>
    %cst_10 = arith.constant -1.000000e+30 : f32
    %46 = vector.shape_cast %45 : vector<1x8x8xi1> to vector<1x8x8xi1>
    %47 = vector.broadcast %46 : vector<1x8x8xi1> to vector<4x8x8xi1>
    %48 = vector.broadcast %cst_10 : f32 to vector<4x8x8xf32>
    %49 = arith.select %47, %48, %41 : vector<4x8x8xi1>, vector<4x8x8xf32>
    %cst_11 = arith.constant dense<0xFF800000> : vector<4x8xf32>
    %50 = vector.multi_reduction <maximumf>, %49, %cst_11 [2] : vector<4x8x8xf32> to vector<4x8xf32>
    %51 = vector.shape_cast %50 : vector<4x8xf32> to vector<4x8x1xf32>
    %52 = vector.broadcast %51 : vector<4x8x1xf32> to vector<4x8x8xf32>
    %53 = arith.subf %49, %52 : vector<4x8x8xf32>
    %54 = math.exp %53 : vector<4x8x8xf32>
    %cst_12 = arith.constant dense<0.000000e+00> : vector<4x8xf32>
    %55 = vector.multi_reduction <add>, %54, %cst_12 [2] : vector<4x8x8xf32> to vector<4x8xf32>
    %56 = vector.shape_cast %55 : vector<4x8xf32> to vector<4x8x1xf32>
    %57 = tpu.reciprocal %56 {approx = true} : vector<4x8x1xf32> -> vector<4x8x1xf32>
    %58 = vector.broadcast %57 : vector<4x8x1xf32> to vector<4x8x8xf32>
    %59 = arith.mulf %54, %58 : vector<4x8x8xf32>
    %60 = arith.truncf %59 : vector<4x8x8xf32> to vector<4x8x8xbf16>
    "tpu.trace_start"() <{level = 10 : i32, message = "hqk,hkd->hqd"}> : () -> ()
    %cst_13 = arith.constant dense<0.000000e+00> : vector<4x8x8xf32>
    %61 = tpu.matmul %60, %40, %cst_13 {dimension_numbers = #tpu.dot_dimension_numbers<[2], [1], [1], [2], [0, 0, 0, 1, 1, 2], [0], [0]>} : vector<4x8x8xbf16>, vector<4x8x8xbf16>, vector<4x8x8xf32> -> vector<4x8x8xf32>
    "tpu.trace_stop"() : () -> ()
    %62 = arith.truncf %61 : vector<4x8x8xf32> to vector<4x8x8xbf16>
    %63 = vector.extract_strided_slice %62 {offsets = [0, 0, 0], sizes = [1, 8, 8], strides = [1, 1, 1]} : vector<4x8x8xbf16> to vector<1x8x8xbf16>
    %64 = vector.shape_cast %63 : vector<1x8x8xbf16> to vector<8x8xbf16>
    %65 = vector.extract_strided_slice %62 {offsets = [1, 0, 0], sizes = [1, 8, 8], strides = [1, 1, 1]} : vector<4x8x8xbf16> to vector<1x8x8xbf16>
    %66 = vector.shape_cast %65 : vector<1x8x8xbf16> to vector<8x8xbf16>
    %67 = vector.extract_strided_slice %62 {offsets = [2, 0, 0], sizes = [1, 8, 8], strides = [1, 1, 1]} : vector<4x8x8xbf16> to vector<1x8x8xbf16>
    %68 = vector.shape_cast %67 : vector<1x8x8xbf16> to vector<8x8xbf16>
    %69 = vector.extract_strided_slice %62 {offsets = [3, 0, 0], sizes = [1, 8, 8], strides = [1, 1, 1]} : vector<4x8x8xbf16> to vector<1x8x8xbf16>
    %70 = vector.shape_cast %69 : vector<1x8x8xbf16> to vector<8x8xbf16>
    %71 = tpu.concatenate %64, %66, %68, %70 in 1 : vector<8x8xbf16>, vector<8x8xbf16>, vector<8x8xbf16>, vector<8x8xbf16> -> vector<8x32xbf16>
    %c0_14 = arith.constant 0 : index
    %c0_15 = arith.constant 0 : index
    %72 = vector.load %arg4[%c0_14, %c0_15] : memref<32x32xbf16, #tpu.memory_space<vmem>>, vector<32x32xbf16>
    %cst_16 = arith.constant dense<0.000000e+00> : vector<8x32xf32>
    %73 = tpu.matmul %71, %72, %cst_16 {dimension_numbers = #tpu.dot_dimension_numbers<[1], [0], [0], [1], [0, 0, 1, 1], [], []>} : vector<8x32xbf16>, vector<32x32xbf16>, vector<8x32xf32> -> vector<8x32xf32>
    %c0_17 = arith.constant 0 : index
    %c0_18 = arith.constant 0 : index
    %74 = vector.load %arg5[%c0_17, %c0_18] : memref<1x32xf32, #tpu.memory_space<vmem>>, vector<1x32xf32>
    %75 = vector.broadcast %74 : vector<1x32xf32> to vector<8x32xf32>
    %76 = arith.addf %73, %75 : vector<8x32xf32>
    %77 = arith.addf %1, %76 : vector<8x32xf32>
    %cst_19 = arith.constant dense<0.000000e+00> : vector<8xf32>
    %78 = vector.multi_reduction <add>, %77, %cst_19 [1] : vector<8x32xf32> to vector<8xf32>
    %79 = vector.shape_cast %78 : vector<8xf32> to vector<8x1xf32>
    %cst_20 = arith.constant 3.200000e+01 : f32
    %80 = vector.broadcast %cst_20 : f32 to vector<8x1xf32>
    %81 = arith.divf %79, %80 : vector<8x1xf32>
    %82 = arith.mulf %77, %77 : vector<8x32xf32>
    %cst_21 = arith.constant dense<0.000000e+00> : vector<8xf32>
    %83 = vector.multi_reduction <add>, %82, %cst_21 [1] : vector<8x32xf32> to vector<8xf32>
    %84 = vector.shape_cast %83 : vector<8xf32> to vector<8x1xf32>
    %cst_22 = arith.constant 3.200000e+01 : f32
    %85 = vector.broadcast %cst_22 : f32 to vector<8x1xf32>
    %86 = arith.divf %84, %85 : vector<8x1xf32>
    %87 = arith.mulf %81, %81 : vector<8x1xf32>
    %88 = arith.subf %86, %87 : vector<8x1xf32>
    %89 = vector.broadcast %81 : vector<8x1xf32> to vector<8x32xf32>
    %90 = arith.subf %77, %89 : vector<8x32xf32>
    %cst_23 = arith.constant 9.99999974E-6 : f32
    %91 = vector.broadcast %cst_23 : f32 to vector<8x1xf32>
    %92 = arith.addf %88, %91 : vector<8x1xf32>
    %93 = math.rsqrt %92 : vector<8x1xf32>
    %94 = vector.broadcast %93 : vector<8x1xf32> to vector<8x32xf32>
    %95 = arith.mulf %90, %94 : vector<8x32xf32>
    %c0_24 = arith.constant 0 : index
    %c0_25 = arith.constant 0 : index
    %96 = vector.load %arg6[%c0_24, %c0_25] : memref<1x32xf32, #tpu.memory_space<vmem>>, vector<1x32xf32>
    %97 = vector.broadcast %96 : vector<1x32xf32> to vector<8x32xf32>
    %98 = arith.mulf %95, %97 : vector<8x32xf32>
    %c0_26 = arith.constant 0 : index
    %c0_27 = arith.constant 0 : index
    %99 = vector.load %arg7[%c0_26, %c0_27] : memref<1x32xf32, #tpu.memory_space<vmem>>, vector<1x32xf32>
    %100 = vector.broadcast %99 : vector<1x32xf32> to vector<8x32xf32>
    %101 = arith.addf %98, %100 : vector<8x32xf32>
    %102 = arith.truncf %101 : vector<8x32xf32> to vector<8x32xbf16>
    %c0_28 = arith.constant 0 : index
    %c0_29 = arith.constant 0 : index
    %103 = vector.load %arg8[%c0_28, %c0_29] : memref<32x64xbf16, #tpu.memory_space<vmem>>, vector<32x64xbf16>
    %cst_30 = arith.constant dense<0.000000e+00> : vector<8x64xf32>
    %104 = tpu.matmul %102, %103, %cst_30 {dimension_numbers = #tpu.dot_dimension_numbers<[1], [0], [0], [1], [0, 0, 1, 1], [], []>} : vector<8x32xbf16>, vector<32x64xbf16>, vector<8x64xf32> -> vector<8x64xf32>
    %c0_31 = arith.constant 0 : index
    %c0_32 = arith.constant 0 : index
    %105 = vector.load %arg9[%c0_31, %c0_32] : memref<1x64xf32, #tpu.memory_space<vmem>>, vector<1x64xf32>
    %106 = vector.broadcast %105 : vector<1x64xf32> to vector<8x64xf32>
    %107 = arith.addf %104, %106 : vector<8x64xf32>
    %cst_33 = arith.constant 0.000000e+00 : f32
    %108 = vector.broadcast %cst_33 : f32 to vector<8x64xf32>
    %109 = arith.maximumf %107, %108 : vector<8x64xf32>
    %110 = arith.truncf %109 : vector<8x64xf32> to vector<8x64xbf16>
    %c0_34 = arith.constant 0 : index
    %c0_35 = arith.constant 0 : index
    %111 = vector.load %arg10[%c0_34, %c0_35] : memref<64x32xbf16, #tpu.memory_space<vmem>>, vector<64x32xbf16>
    %cst_36 = arith.constant dense<0.000000e+00> : vector<8x32xf32>
    %112 = tpu.matmul %110, %111, %cst_36 {dimension_numbers = #tpu.dot_dimension_numbers<[1], [0], [0], [1], [0, 0, 1, 1], [], []>} : vector<8x64xbf16>, vector<64x32xbf16>, vector<8x32xf32> -> vector<8x32xf32>
    %c0_37 = arith.constant 0 : index
    %c0_38 = arith.constant 0 : index
    %113 = vector.load %arg11[%c0_37, %c0_38] : memref<1x32xf32, #tpu.memory_space<vmem>>, vector<1x32xf32>
    %114 = vector.broadcast %113 : vector<1x32xf32> to vector<8x32xf32>
    %115 = arith.addf %112, %114 : vector<8x32xf32>
    %116 = arith.addf %101, %115 : vector<8x32xf32>
    %cst_39 = arith.constant dense<0.000000e+00> : vector<8xf32>
    %117 = vector.multi_reduction <add>, %116, %cst_39 [1] : vector<8x32xf32> to vector<8xf32>
    %118 = vector.shape_cast %117 : vector<8xf32> to vector<8x1xf32>
    %cst_40 = arith.constant 3.200000e+01 : f32
    %119 = vector.broadcast %cst_40 : f32 to vector<8x1xf32>
    %120 = arith.divf %118, %119 : vector<8x1xf32>
    %121 = arith.mulf %116, %116 : vector<8x32xf32>
    %cst_41 = arith.constant dense<0.000000e+00> : vector<8xf32>
    %122 = vector.multi_reduction <add>, %121, %cst_41 [1] : vector<8x32xf32> to vector<8xf32>
    %123 = vector.shape_cast %122 : vector<8xf32> to vector<8x1xf32>
    %cst_42 = arith.constant 3.200000e+01 : f32
    %124 = vector.broadcast %cst_42 : f32 to vector<8x1xf32>
    %125 = arith.divf %123, %124 : vector<8x1xf32>
    %126 = arith.mulf %120, %120 : vector<8x1xf32>
    %127 = arith.subf %125, %126 : vector<8x1xf32>
    %128 = vector.broadcast %120 : vector<8x1xf32> to vector<8x32xf32>
    %129 = arith.subf %116, %128 : vector<8x32xf32>
    %cst_43 = arith.constant 9.99999974E-6 : f32
    %130 = vector.broadcast %cst_43 : f32 to vector<8x1xf32>
    %131 = arith.addf %127, %130 : vector<8x1xf32>
    %132 = math.rsqrt %131 : vector<8x1xf32>
    %133 = vector.broadcast %132 : vector<8x1xf32> to vector<8x32xf32>
    %134 = arith.mulf %129, %133 : vector<8x32xf32>
    %c0_44 = arith.constant 0 : index
    %c0_45 = arith.constant 0 : index
    %135 = vector.load %arg12[%c0_44, %c0_45] : memref<1x32xf32, #tpu.memory_space<vmem>>, vector<1x32xf32>
    %136 = vector.broadcast %135 : vector<1x32xf32> to vector<8x32xf32>
    %137 = arith.mulf %134, %136 : vector<8x32xf32>
    %c0_46 = arith.constant 0 : index
    %c0_47 = arith.constant 0 : index
    %138 = vector.load %arg13[%c0_46, %c0_47] : memref<1x32xf32, #tpu.memory_space<vmem>>, vector<1x32xf32>
    %139 = vector.broadcast %138 : vector<1x32xf32> to vector<8x32xf32>
    %140 = arith.addf %137, %139 : vector<8x32xf32>
    %c0_48 = arith.constant 0 : index
    %c0_49 = arith.constant 0 : index
    %c0_50 = arith.constant 0 : index
    %141 = vector.load %arg14[%c0_48, %c0_49, %c0_50] : memref<1x8x32xf32, #tpu.memory_space<vmem>>, vector<1x8x32xf32>
    %142 = vector.shape_cast %141 : vector<1x8x32xf32> to vector<8x32xf32>
    %143 = vector.shape_cast %140 : vector<8x32xf32> to vector<1x8x32xf32>
    tpu.vector_store %arg14[%c0_48, %c0_49, %c0_50], %143 {strides = array<i32>} : memref<1x8x32xf32, #tpu.memory_space<vmem>>, vector<1x8x32xf32>,
    return
  }
  func.func @transform_0(%arg0: i32) -> (i32, i32, i32) {
    %c0_i32 = arith.constant 0 : i32
    %c0_i32_0 = arith.constant 0 : i32
    %c0_i32_1 = arith.constant 0 : i32
    return %arg0, %c0_i32, %c0_i32_0 : i32, i32, i32
  }
  func.func @transform_1(%arg0: i32) -> (i32, i32) {
    %c0_i32 = arith.constant 0 : i32
    %c0_i32_0 = arith.constant 0 : i32
    %c0_i32_1 = arith.constant 0 : i32
    return %c0_i32, %c0_i32_0 : i32, i32
  }
  func.func @transform_2(%arg0: i32) -> (i32, i32) {
    %c0_i32 = arith.constant 0 : i32
    %c0_i32_0 = arith.constant 0 : i32
    %c0_i32_1 = arith.constant 0 : i32
    return %c0_i32, %c0_i32_0 : i32, i32
  }
  func.func @transform_3(%arg0: i32) -> (i32, i32) {
    %c0_i32 = arith.constant 0 : i32
    %c0_i32_0 = arith.constant 0 : i32
    %c0_i32_1 = arith.constant 0 : i32
    return %c0_i32, %c0_i32_0 : i32, i32
  }
  func.func @transform_4(%arg0: i32) -> (i32, i32) {
    %c0_i32 = arith.constant 0 : i32
    %c0_i32_0 = arith.constant 0 : i32
    %c0_i32_1 = arith.constant 0 : i32
    return %c0_i32, %c0_i32_0 : i32, i32
  }
  func.func @transform_5(%arg0: i32) -> (i32, i32) {
    %c0_i32 = arith.constant 0 : i32
    %c0_i32_0 = arith.constant 0 : i32
    %c0_i32_1 = arith.constant 0 : i32
    return %c0_i32, %c0_i32_0 : i32, i32
  }
  func.func @transform_6(%arg0: i32) -> (i32, i32) {
    %c0_i32 = arith.constant 0 : i32
    %c0_i32_0 = arith.constant 0 : i32
    %c0_i32_1 = arith.constant 0 : i32
    return %c0_i32, %c0_i32_0 : i32, i32
  }
  func.func @transform_7(%arg0: i32) -> (i32, i32) {
    %c0_i32 = arith.constant 0 : i32
    %c0_i32_0 = arith.constant 0 : i32
    %c0_i32_1 = arith.constant 0 : i32
    return %c0_i32, %c0_i32_0 : i32, i32
  }
  func.func @transform_8(%arg0: i32) -> (i32, i32) {
    %c0_i32 = arith.constant 0 : i32
    %c0_i32_0 = arith.constant 0 : i32
    %c0_i32_1 = arith.constant 0 : i32
    return %c0_i32, %c0_i32_0 : i32, i32
  }
  func.func @transform_9(%arg0: i32) -> (i32, i32) {
    %c0_i32 = arith.constant 0 : i32
    %c0_i32_0 = arith.constant 0 : i32
    %c0_i32_1 = arith.constant 0 : i32
    return %c0_i32, %c0_i32_0 : i32, i32
  }
  func.func @transform_10(%arg0: i32) -> (i32, i32) {
    %c0_i32 = arith.constant 0 : i32
    %c0_i32_0 = arith.constant 0 : i32
    %c0_i32_1 = arith.constant 0 : i32
    return %c0_i32, %c0_i32_0 : i32, i32
  }
  func.func @transform_11(%arg0: i32) -> (i32, i32) {
    %c0_i32 = arith.constant 0 : i32
    %c0_i32_0 = arith.constant 0 : i32
    %c0_i32_1 = arith.constant 0 : i32
    return %c0_i32, %c0_i32_0 : i32, i32
  }
  func.func @transform_12(%arg0: i32) -> (i32, i32) {
    %c0_i32 = arith.constant 0 : i32
    %c0_i32_0 = arith.constant 0 : i32
    %c0_i32_1 = arith.constant 0 : i32
    return %c0_i32, %c0_i32_0 : i32, i32
  }
  func.func @transform_13(%arg0: i32) -> (i32, i32, i32) {
    %c0_i32 = arith.constant 0 : i32
    %c0_i32_0 = arith.constant 0 : i32
    %c0_i32_1 = arith.constant 0 : i32
    return %arg0, %c0_i32, %c0_i32_0 : i32, i32, i32
  }
}

</mosaic_0001>

<llo_original>
// kernel: tpu_custom_call.1
$region0: #{tpu_custom_call.1}
  #allocation0 [shape = 'u32[]', space=smem, size = 0x4, offset = 0x4, fixed_abs, tag = 'smem constant byte address 0x4 - core index']
  #allocation1 [shape = 'u32[72,128]{1,0:T(1,128)}', space=vmem, size = 0x9000, scoped, tag = 'internal scratch']
  %s0 = inlined_call_operand.vmem [shape: f32[2,8,32], index: 0, kind: input, shape index: {}]
  %s1 = inlined_call_operand.vmem [shape: bf16[32,96], index: 1, kind: input, shape index: {}]
  %s2 = inlined_call_operand.vmem [shape: f32[1,96], index: 2, kind: input, shape index: {}]
  %s3 = inlined_call_operand.vmem [shape: bf16[32,32], index: 3, kind: input, shape index: {}]
  %s4 = inlined_call_operand.vmem [shape: f32[1,32], index: 4, kind: input, shape index: {}]
  %s5 = inlined_call_operand.vmem [shape: f32[1,32], index: 5, kind: input, shape index: {}]
  %s6 = inlined_call_operand.vmem [shape: f32[1,32], index: 6, kind: input, shape index: {}]
  %s7 = inlined_call_operand.hbm [shape: bf16[32,64], index: 7, kind: input, shape index: {}]
  %s8 = inlined_call_operand.vmem [shape: f32[1,64], index: 8, kind: input, shape index: {}]
  %s9 = inlined_call_operand.vmem [shape: bf16[64,32], index: 9, kind: input, shape index: {}]
  %s10 = inlined_call_operand.vmem [shape: f32[1,32], index: 10, kind: input, shape index: {}]
  %s11 = inlined_call_operand.vmem [shape: f32[1,32], index: 11, kind: input, shape index: {}]
  %s12 = inlined_call_operand.vmem [shape: f32[1,32], index: 12, kind: input, shape index: {}]
  %s13 = inlined_call_operand.hbm [shape: f32[2,8,32], index: 13, kind: output, shape index: {}]
  %s14 = sld [smem:[#allocation0]]
  $region89: #{tpu_custom_call.1} parent=0
    _
  %s16 = ssub.s32 1, %s14
  %s17 = scalar_select 0, %s16, %s14
  $region1: #{tpu_custom_call.1} parent=0
    #allocation2 [shape = 'u8[8192]{0}', space=vmem, size = 0x2000, scoped, tag = 'input window, operand 7, single buffered']
    #allocation3 [shape = 's32[2]{0}', space=sflag, size = 0x8, scoped, tag = 'scoped memory for tpu_custom_call.1']
    #allocation4 [shape = 's32[2]{0}', space=sflag, size = 0x8, scoped, tag = 'scoped memory for tpu_custom_call.1']
    #allocation5 [shape = 'u8[8192]{0}', space=vmem, size = 0x2000, scoped, tag = 'output window, operand 0']
    %18 = vsyncpa [#allocation3], 0
    %19 = vsyncpa [#allocation4], 0
    %s20 = scalar_lea.sflag [#allocation4], 1
    %21 = vsyncpa %s20, 0
    loop: start=0, step=1, limit=4
    $region2: #{tpu_custom_call.1} parent=1 // loop_pre_header
      _
    $region3: #{tpu_custom_call.1} parent=1 // loop_header
      %s23 = sphi 0, %s27
      %p24 = scmp.ge.s32.totalorder %s23, 4
      %s33 = sphi 0, %s35
      %s36 = sphi 0, %s33
      %s37 = sphi 0, %s36
      %s53 = sphi 0, %s37
      %s57 = sphi 0, %s57
      %s59 = sphi 0, %s57
      %s60 = sphi 0, %s59
      %s74 = sphi 0, %s60
      %s78 = sphi 0, %s78
      %s80 = sphi 0, %s78
      %s81 = sphi 0, %s80
      %s95 = sphi 0, %s81
      %s99 = sphi 0, %s99
      %s101 = sphi 0, %s99
      %s102 = sphi 0, %s101
      %s116 = sphi 0, %s102
      %s120 = sphi 0, %s120
      %s122 = sphi 0, %s120
      %s123 = sphi 0, %s122
      %s137 = sphi 0, %s123
      %s141 = sphi 0, %s141
      %s143 = sphi 0, %s141
      %s144 = sphi 0, %s143
      %s158 = sphi 0, %s144
      %s162 = sphi 0, %s162
      %s164 = sphi 0, %s162
      %s165 = sphi 0, %s164
      %s179 = sphi 0, %s165
      %s183 = sphi 0, %s183
      %s185 = sphi 0, %s183
      %s186 = sphi 0, %s185
      %s200 = sphi 0, %s186
      %s204 = sphi 0, %s204
      %s206 = sphi 0, %s204
      %s207 = sphi 0, %s206
      %s221 = sphi 0, %s207
      %s225 = sphi 0, %s225
      %s227 = sphi 0, %s225
      %s228 = sphi 0, %s227
      %s242 = sphi 0, %s228
      %s246 = sphi 0, %s246
      %s248 = sphi 0, %s246
      %s249 = sphi 0, %s248
      %s263 = sphi 0, %s249
      %s267 = sphi 0, %s267
      %s269 = sphi 0, %s267
      %s270 = sphi 0, %s269
      %s284 = sphi 0, %s270
      %s288 = sphi 0, %s288
      %s290 = sphi 0, %s288
      %s291 = sphi 0, %s290
      %s305 = sphi 0, %s291
      %s311 = sphi 0, %s313
      %s314 = sphi 0, %s311
      %s315 = sphi 0, %s314
      %s331 = sphi 0, %s315
    $region4: #{tpu_custom_call.1} parent=1 // loop_header_branch
      %26 = sbr.rel (%p24) target = $region8
    $region5: #{tpu_custom_call.1} parent=1 // loop_body
      %s28 = ssub.s32 %s23, 1
      %s29 = ssub.s32 %s23, 2
      %s30 = sadd.s32 %s23, 1
      %s31 = ssub.s32 %s23, %s30
      %p32 = scmp.eq.s32.totalorder %s31, 0
      %s34 = sadd.s32 %s33, 1
      %s35 = scalar_select %p32, %s33, %s34
      %p38 = pneg %p32
      %p39 = scmp.eq.s32.totalorder %s23, 1
      %p40 = por %p38, %p39
      %p41 = scmp.ne.s32.totalorder %s33, %s36
      %p42 = scmp.eq.s32.totalorder %s23, 0
      %p43 = por %p41, %p42
      %p44 = scmp.ne.s32.totalorder %s33, %s36
      %p45 = scmp.eq.s32.totalorder %s28, 1
      %p46 = por %p44, %p45
      %p47 = scmp.ne.s32.totalorder %s36, %s37
      %p48 = scmp.eq.s32.totalorder %s28, 0
      %p49 = por %p47, %p48
      %p50 = scmp.ne.s32.totalorder %s36, %s37
      %p51 = scmp.eq.s32.totalorder %s29, 1
      %p52 = por %p50, %p51
      %p54 = scmp.ne.s32.totalorder %s37, %s53
      %p55 = scmp.eq.s32.totalorder %s29, 0
      %p56 = por %p54, %p55
      %s58 = sadd.s32 %s57, 1
      %p61 = scmp.eq.s32.totalorder %s23, 1
      %p62 = scmp.ne.s32.totalorder %s57, %s59
      %p63 = scmp.eq.s32.totalorder %s23, 0
      %p64 = por %p62, %p63
      %p65 = scmp.ne.s32.totalorder %s57, %s59
      %p66 = scmp.eq.s32.totalorder %s28, 1
      %p67 = por %p65, %p66
      %p68 = scmp.ne.s32.totalorder %s59, %s60
      %p69 = scmp.eq.s32.totalorder %s28, 0
      %p70 = por %p68, %p69
      %p71 = scmp.ne.s32.totalorder %s59, %s60
      %p72 = scmp.eq.s32.totalorder %s29, 1
      %p73 = por %p71, %p72
      %p75 = scmp.ne.s32.totalorder %s60, %s74
      %p76 = scmp.eq.s32.totalorder %s29, 0
      %p77 = por %p75, %p76
      %s79 = sadd.s32 %s78, 1
      %p82 = scmp.eq.s32.totalorder %s23, 1
      %p83 = scmp.ne.s32.totalorder %s78, %s80
      %p84 = scmp.eq.s32.totalorder %s23, 0
      %p85 = por %p83, %p84
      %p86 = scmp.ne.s32.totalorder %s78, %s80
      %p87 = scmp.eq.s32.totalorder %s28, 1
      %p88 = por %p86, %p87
      %p89 = scmp.ne.s32.totalorder %s80, %s81
      %p90 = scmp.eq.s32.totalorder %s28, 0
      %p91 = por %p89, %p90
      %p92 = scmp.ne.s32.totalorder %s80, %s81
      %p93 = scmp.eq.s32.totalorder %s29, 1
      %p94 = por %p92, %p93
      %p96 = scmp.ne.s32.totalorder %s81, %s95
      %p97 = scmp.eq.s32.totalorder %s29, 0
      %p98 = por %p96, %p97
      %s100 = sadd.s32 %s99, 1
      %p103 = scmp.eq.s32.totalorder %s23, 1
      %p104 = scmp.ne.s32.totalorder %s99, %s101
      %p105 = scmp.eq.s32.totalorder %s23, 0
      %p106 = por %p104, %p105
      %p107 = scmp.ne.s32.totalorder %s99, %s101
      %p108 = scmp.eq.s32.totalorder %s28, 1
      %p109 = por %p107, %p108
      %p110 = scmp.ne.s32.totalorder %s101, %s102
      %p111 = scmp.eq.s32.totalorder %s28, 0
      %p112 = por %p110, %p111
      %p113 = scmp.ne.s32.totalorder %s101, %s102
      %p114 = scmp.eq.s32.totalorder %s29, 1
      %p115 = por %p113, %p114
      %p117 = scmp.ne.s32.totalorder %s102, %s116
      %p118 = scmp.eq.s32.totalorder %s29, 0
      %p119 = por %p117, %p118
      %s121 = sadd.s32 %s120, 1
      %p124 = scmp.eq.s32.totalorder %s23, 1
      %p125 = scmp.ne.s32.totalorder %s120, %s122
      %p126 = scmp.eq.s32.totalorder %s23, 0
      %p127 = por %p125, %p126
      %p128 = scmp.ne.s32.totalorder %s120, %s122
      %p129 = scmp.eq.s32.totalorder %s28, 1
      %p130 = por %p128, %p129
      %p131 = scmp.ne.s32.totalorder %s122, %s123
      %p132 = scmp.eq.s32.totalorder %s28, 0
      %p133 = por %p131, %p132
      %p134 = scmp.ne.s32.totalorder %s122, %s123
      %p135 = scmp.eq.s32.totalorder %s29, 1
      %p136 = por %p134, %p135
      %p138 = scmp.ne.s32.totalorder %s123, %s137
      %p139 = scmp.eq.s32.totalorder %s29, 0
      %p140 = por %p138, %p139
      %s142 = sadd.s32 %s141, 1
      %p145 = scmp.eq.s32.totalorder %s23, 1
      %p146 = scmp.ne.s32.totalorder %s141, %s143
      %p147 = scmp.eq.s32.totalorder %s23, 0
      %p148 = por %p146, %p147
      %p149 = scmp.ne.s32.totalorder %s141, %s143
      %p150 = scmp.eq.s32.totalorder %s28, 1
      %p151 = por %p149, %p150
      %p152 = scmp.ne.s32.totalorder %s143, %s144
      %p153 = scmp.eq.s32.totalorder %s28, 0
      %p154 = por %p152, %p153
      %p155 = scmp.ne.s32.totalorder %s143, %s144
      %p156 = scmp.eq.s32.totalorder %s29, 1
      %p157 = por %p155, %p156
      %p159 = scmp.ne.s32.totalorder %s144, %s158
      %p160 = scmp.eq.s32.totalorder %s29, 0
      %p161 = por %p159, %p160
      %s163 = sadd.s32 %s162, 1
      %p166 = scmp.eq.s32.totalorder %s23, 1
      %p167 = scmp.ne.s32.totalorder %s162, %s164
      %p168 = scmp.eq.s32.totalorder %s23, 0
      %p169 = por %p167, %p168
      %p170 = scmp.ne.s32.totalorder %s162, %s164
      %p171 = scmp.eq.s32.totalorder %s28, 1
      %p172 = por %p170, %p171
      %p173 = scmp.ne.s32.totalorder %s164, %s165
      %p174 = scmp.eq.s32.totalorder %s28, 0
      %p175 = por %p173, %p174
      %p176 = scmp.ne.s32.totalorder %s164, %s165
      %p177 = scmp.eq.s32.totalorder %s29, 1
      %p178 = por %p176, %p177
      %p180 = scmp.ne.s32.totalorder %s165, %s179
      %p181 = scmp.eq.s32.totalorder %s29, 0
      %p182 = por %p180, %p181
      %s184 = sadd.s32 %s183, 1
      %p187 = scmp.eq.s32.totalorder %s23, 1
      %p188 = scmp.ne.s32.totalorder %s183, %s185
      %p189 = scmp.eq.s32.totalorder %s23, 0
      %p190 = por %p188, %p189
      %p191 = scmp.ne.s32.totalorder %s183, %s185
      %p192 = scmp.eq.s32.totalorder %s28, 1
      %p193 = por %p191, %p192
      %p194 = scmp.ne.s32.totalorder %s185, %s186
      %p195 = scmp.eq.s32.totalorder %s28, 0
      %p196 = por %p194, %p195
      %p197 = scmp.ne.s32.totalorder %s185, %s186
      %p198 = scmp.eq.s32.totalorder %s29, 1
      %p199 = por %p197, %p198
      %p201 = scmp.ne.s32.totalorder %s186, %s200
      %p202 = scmp.eq.s32.totalorder %s29, 0
      %p203 = por %p201, %p202
      %s205 = sadd.s32 %s204, 1
      %p208 = scmp.eq.s32.totalorder %s23, 1
      %p209 = scmp.ne.s32.totalorder %s204, %s206
      %p210 = scmp.eq.s32.totalorder %s23, 0
      %p211 = por %p209, %p210
      %p212 = scmp.ne.s32.totalorder %s204, %s206
      %p213 = scmp.eq.s32.totalorder %s28, 1
      %p214 = por %p212, %p213
      %p215 = scmp.ne.s32.totalorder %s206, %s207
      %p216 = scmp.eq.s32.totalorder %s28, 0
      %p217 = por %p215, %p216
      %p218 = scmp.ne.s32.totalorder %s206, %s207
      %p219 = scmp.eq.s32.totalorder %s29, 1
      %p220 = por %p218, %p219
      %p222 = scmp.ne.s32.totalorder %s207, %s221
      %p223 = scmp.eq.s32.totalorder %s29, 0
      %p224 = por %p222, %p223
      %s226 = sadd.s32 %s225, 1
      %p229 = scmp.eq.s32.totalorder %s23, 1
      %p230 = scmp.ne.s32.totalorder %s225, %s227
      %p231 = scmp.eq.s32.totalorder %s23, 0
      %p232 = por %p230, %p231
      %p233 = scmp.ne.s32.totalorder %s225, %s227
      %p234 = scmp.eq.s32.totalorder %s28, 1
      %p235 = por %p233, %p234
      %p236 = scmp.ne.s32.totalorder %s227, %s228
      %p237 = scmp.eq.s32.totalorder %s28, 0
      %p238 = por %p236, %p237
      %p239 = scmp.ne.s32.totalorder %s227, %s228
      %p240 = scmp.eq.s32.totalorder %s29, 1
      %p241 = por %p239, %p240
      %p243 = scmp.ne.s32.totalorder %s228, %s242
      %p244 = scmp.eq.s32.totalorder %s29, 0
      %p245 = por %p243, %p244
      %s247 = sadd.s32 %s246, 1
      %p250 = scmp.eq.s32.totalorder %s23, 1
      %p251 = scmp.ne.s32.totalorder %s246, %s248
      %p252 = scmp.eq.s32.totalorder %s23, 0
      %p253 = por %p251, %p252
      %p254 = scmp.ne.s32.totalorder %s246, %s248
      %p255 = scmp.eq.s32.totalorder %s28, 1
      %p256 = por %p254, %p255
      %p257 = scmp.ne.s32.totalorder %s248, %s249
      %p258 = scmp.eq.s32.totalorder %s28, 0
      %p259 = por %p257, %p258
      %p260 = scmp.ne.s32.totalorder %s248, %s249
      %p261 = scmp.eq.s32.totalorder %s29, 1
      %p262 = por %p260, %p261
      %p264 = scmp.ne.s32.totalorder %s249, %s263
      %p265 = scmp.eq.s32.totalorder %s29, 0
      %p266 = por %p264, %p265
      %s268 = sadd.s32 %s267, 1
      %p271 = scmp.eq.s32.totalorder %s23, 1
      %p272 = scmp.ne.s32.totalorder %s267, %s269
      %p273 = scmp.eq.s32.totalorder %s23, 0
      %p274 = por %p272, %p273
      %p275 = scmp.ne.s32.totalorder %s267, %s269
      %p276 = scmp.eq.s32.totalorder %s28, 1
      %p277 = por %p275, %p276
      %p278 = scmp.ne.s32.totalorder %s269, %s270
      %p279 = scmp.eq.s32.totalorder %s28, 0
      %p280 = por %p278, %p279
      %p281 = scmp.ne.s32.totalorder %s269, %s270
      %p282 = scmp.eq.s32.totalorder %s29, 1
      %p283 = por %p281, %p282
      %p285 = scmp.ne.s32.totalorder %s270, %s284
      %p286 = scmp.eq.s32.totalorder %s29, 0
      %p287 = por %p285, %p286
      %s289 = sadd.s32 %s288, 1
      %p292 = scmp.eq.s32.totalorder %s23, 1
      %p293 = scmp.ne.s32.totalorder %s288, %s290
      %p294 = scmp.eq.s32.totalorder %s23, 0
      %p295 = por %p293, %p294
      %p296 = scmp.ne.s32.totalorder %s288, %s290
      %p297 = scmp.eq.s32.totalorder %s28, 1
      %p298 = por %p296, %p297
      %p299 = scmp.ne.s32.totalorder %s290, %s291
      %p300 = scmp.eq.s32.totalorder %s28, 0
      %p301 = por %p299, %p300
      %p302 = scmp.ne.s32.totalorder %s290, %s291
      %p303 = scmp.eq.s32.totalorder %s29, 1
      %p304 = por %p302, %p303
      %p306 = scmp.ne.s32.totalorder %s291, %s305
      %p307 = scmp.eq.s32.totalorder %s29, 0
      %p308 = por %p306, %p307
      %s309 = ssub.s32 %s23, %s30
      %p310 = scmp.eq.s32.totalorder %s309, 0
      %s312 = sadd.s32 %s311, 1
      %s313 = scalar_select %p310, %s311, %s312
      %p316 = pneg %p310
      %p317 = scmp.eq.s32.totalorder %s23, 1
      %p318 = por %p316, %p317
      %p319 = scmp.ne.s32.totalorder %s311, %s314
      %p320 = scmp.eq.s32.totalorder %s23, 0
      %p321 = por %p319, %p320
      %p322 = scmp.ne.s32.totalorder %s311, %s314
      %p323 = scmp.eq.s32.totalorder %s28, 1
      %p324 = por %p322, %p323
      %p325 = scmp.ne.s32.totalorder %s314, %s315
      %p326 = scmp.eq.s32.totalorder %s28, 0
      %p327 = por %p325, %p326
      %p328 = scmp.ne.s32.totalorder %s314, %s315
      %p329 = scmp.eq.s32.totalorder %s29, 1
      %p330 = por %p328, %p329
      %p332 = scmp.ne.s32.totalorder %s315, %s331
      %p333 = scmp.eq.s32.totalorder %s29, 0
      %p334 = por %p332, %p333
      %p335 = scmp.le.s32.totalorder 1, %s23
      %p336 = scmp.lt.s32.totalorder %s23, 3
      %p337 = pnand %p335, %p336
      %p338 = pneg %p337
      // Predicated region
      $region9: #{tpu_custom_call.1} parent=5 // pred_check
        _
      $region10: #{tpu_custom_call.1} parent=5 // pred_check_branch
        %340 = sbr.rel (%p337) target = $region12
      $region11: #{tpu_custom_call.1} parent=5 // pred_region
        %s341 = ssub.s32 %s23, 1
        // Predicated region
        $region13: #{tpu_custom_call.1} parent=11 // pred_check
          %p342 = pneg %p70
        $region14: #{tpu_custom_call.1} parent=11 // pred_check_branch
          %344 = sbr.rel (%p342) target = $region16
        $region15: #{tpu_custom_call.1} parent=11 // pred_region
          _
        $region16: #{tpu_custom_call.1} parent=11 // pred_fallthru
          _
        // Predicated region
        $region17: #{tpu_custom_call.1} parent=11 // pred_check
          %p345 = pneg %p91
        $region18: #{tpu_custom_call.1} parent=11 // pred_check_branch
          %347 = sbr.rel (%p345) target = $region20
        $region19: #{tpu_custom_call.1} parent=11 // pred_region
          _
        $region20: #{tpu_custom_call.1} parent=11 // pred_fallthru
          _
        // Predicated region
        $region21: #{tpu_custom_call.1} parent=11 // pred_check
          %p348 = pneg %p112
        $region22: #{tpu_custom_call.1} parent=11 // pred_check_branch
          %350 = sbr.rel (%p348) target = $region24
        $region23: #{tpu_custom_call.1} parent=11 // pred_region
          _
        $region24: #{tpu_custom_call.1} parent=11 // pred_fallthru
          _
        // Predicated region
        $region25: #{tpu_custom_call.1} parent=11 // pred_check
          %p351 = pneg %p133
        $region26: #{tpu_custom_call.1} parent=11 // pred_check_branch
          %353 = sbr.rel (%p351) target = $region28
        $region27: #{tpu_custom_call.1} parent=11 // pred_region
          _
        $region28: #{tpu_custom_call.1} parent=11 // pred_fallthru
          _
        // Predicated region
        $region29: #{tpu_custom_call.1} parent=11 // pred_check
          %p354 = pneg %p154
        $region30: #{tpu_custom_call.1} parent=11 // pred_check_branch
          %356 = sbr.rel (%p354) target = $region32
        $region31: #{tpu_custom_call.1} parent=11 // pred_region
          _
        $region32: #{tpu_custom_call.1} parent=11 // pred_fallthru
          _
        // Predicated region
        $region33: #{tpu_custom_call.1} parent=11 // pred_check
          %p357 = pneg %p175
        $region34: #{tpu_custom_call.1} parent=11 // pred_check_branch
          %359 = sbr.rel (%p357) target = $region36
        $region35: #{tpu_custom_call.1} parent=11 // pred_region
          _
        $region36: #{tpu_custom_call.1} parent=11 // pred_fallthru
          _
        // Predicated region
        $region37: #{tpu_custom_call.1} parent=11 // pred_check
          %p360 = pneg %p196
        $region38: #{tpu_custom_call.1} parent=11 // pred_check_branch
          %362 = sbr.rel (%p360) target = $region40
        $region39: #{tpu_custom_call.1} parent=11 // pred_region
          %364 = vsyncadd [#allocation3], 0
          %s365 = sshll.u32 %s7, 4
          %s366 = int_to_ptr.hbm [resolvable:$true] %s365
          %s367 = sshll.u32 [#allocation2], 4
          %s368 = int_to_ptr.vmem [resolvable:$true] %s367
          %373 = dma.hbm_to_vmem [thread:$0]  %s366, 256, %s368, [#allocation3], 64, 64, 4
        $region40: #{tpu_custom_call.1} parent=11 // pred_fallthru
          _
        // Predicated region
        $region41: #{tpu_custom_call.1} parent=11 // pred_check
          %p374 = pneg %p217
        $region42: #{tpu_custom_call.1} parent=11 // pred_check_branch
          %376 = sbr.rel (%p374) target = $region44
        $region43: #{tpu_custom_call.1} parent=11 // pred_region
          _
        $region44: #{tpu_custom_call.1} parent=11 // pred_fallthru
          _
        // Predicated region
        $region45: #{tpu_custom_call.1} parent=11 // pred_check
          %p377 = pneg %p238
        $region46: #{tpu_custom_call.1} parent=11 // pred_check_branch
          %379 = sbr.rel (%p377) target = $region48
        $region47: #{tpu_custom_call.1} parent=11 // pred_region
          _
        $region48: #{tpu_custom_call.1} parent=11 // pred_fallthru
          _
        // Predicated region
        $region49: #{tpu_custom_call.1} parent=11 // pred_check
          %p380 = pneg %p259
        $region50: #{tpu_custom_call.1} parent=11 // pred_check_branch
          %382 = sbr.rel (%p380) target = $region52
        $region51: #{tpu_custom_call.1} parent=11 // pred_region
          _
        $region52: #{tpu_custom_call.1} parent=11 // pred_fallthru
          _
        // Predicated region
        $region53: #{tpu_custom_call.1} parent=11 // pred_check
          %p383 = pneg %p280
        $region54: #{tpu_custom_call.1} parent=11 // pred_check_branch
          %385 = sbr.rel (%p383) target = $region56
        $region55: #{tpu_custom_call.1} parent=11 // pred_region
          _
        $region56: #{tpu_custom_call.1} parent=11 // pred_fallthru
          _
        // Predicated region
        $region57: #{tpu_custom_call.1} parent=11 // pred_check
          %p386 = pneg %p301
        $region58: #{tpu_custom_call.1} parent=11 // pred_check_branch
          %388 = sbr.rel (%p386) target = $region60
        $region59: #{tpu_custom_call.1} parent=11 // pred_region
          _
        $region60: #{tpu_custom_call.1} parent=11 // pred_fallthru
          _
      $region12: #{tpu_custom_call.1} parent=5 // pred_fallthru
        _
      %p389 = scmp.lt.s32.totalorder %s23, 2
      // Predicated region
      $region61: #{tpu_custom_call.1} parent=5 // pred_check
        %p390 = pneg %p389
      $region62: #{tpu_custom_call.1} parent=5 // pred_check_branch
        %392 = sbr.rel (%p390) target = $region64
      $region63: #{tpu_custom_call.1} parent=5 // pred_region
        // Predicated region
        $region65: #{tpu_custom_call.1} parent=63 // pred_check
          %p393 = pneg %p43
        $region66: #{tpu_custom_call.1} parent=63 // pred_check_branch
          %395 = sbr.rel (%p393) target = $region68
        $region67: #{tpu_custom_call.1} parent=63 // pred_region
          %p396 = scmp.lt.s32.totalorder %s23, 1
          %s397 = scalar_select %p396, %s23, 1
          %s398 = smul.addr %s397, 8
          %s399 = scalar_lea.vmem %s0, %s398
        $region68: #{tpu_custom_call.1} parent=63 // pred_fallthru
          _
      $region64: #{tpu_custom_call.1} parent=5 // pred_fallthru
        _
      %p400 = scmp.le.s32.totalorder 1, %s23
      %p401 = scmp.lt.s32.totalorder %s23, 3
      %p402 = pnand %p400, %p401
      %p403 = pneg %p402
      // Predicated region
      $region69: #{tpu_custom_call.1} parent=5 // pred_check
        _
      $region70: #{tpu_custom_call.1} parent=5 // pred_check_branch
        %405 = sbr.rel (%p402) target = $region72
      $region71: #{tpu_custom_call.1} parent=5 // pred_region
        %s406 = ssub.s32 %s23, 1
        // Predicated region
        $region73: #{tpu_custom_call.1} parent=71 // pred_check
          %p407 = pneg %p196
        $region74: #{tpu_custom_call.1} parent=71 // pred_check_branch
          %409 = sbr.rel (%p407) target = $region76
        $region75: #{tpu_custom_call.1} parent=71 // pred_region
          %411 = dma.done [#allocation3], 256
        $region76: #{tpu_custom_call.1} parent=71 // pred_fallthru
          _
        %p412 = scmp.lt.s32.totalorder %s28, 1
        %s413 = scalar_select %p412, %s28, 1
        %s414 = smul.addr %s413, 8
        %s415 = scalar_lea.vmem %s0, %s414
        %p416 = pneg %p49
        %p417 = pneg %p46
        %p418 = pneg %p70
        %p419 = pneg %p67
        %p420 = pneg %p91
        %p421 = pneg %p88
        %p422 = pneg %p112
        %p423 = pneg %p109
        %p424 = pneg %p133
        %p425 = pneg %p130
        %p426 = pneg %p154
        %p427 = pneg %p151
        %p428 = pneg %p175
        %p429 = pneg %p172
        %p430 = pneg %p196
        %p431 = pneg %p193
        %p432 = pneg %p217
        %p433 = pneg %p214
        %p434 = pneg %p238
        %p435 = pneg %p235
        %p436 = pneg %p259
        %p437 = pneg %p256
        %p438 = pneg %p280
        %p439 = pneg %p277
        %p440 = pneg %p301
        %p441 = pneg %p298
        %p442 = pneg %p327
        %p443 = pneg %p324
        %s444 = sand.u32 %s314, 1
        %s445 = scalar_lea.sflag [#allocation4], %s444
        %s446 = sand.u32 %s314, 1
        %s447 = smul.addr %s446, 8
        %s448 = scalar_lea.vmem [#allocation5], %s447
        %p449 = scmp.lt.s32.totalorder %s28, 1
        %s450 = scalar_select %p449, %s28, 1
        %s451 = smul.addr %s450, 8
        %s452 = scalar_lea.vmem %s0, %s451
        %v454 = vld [vmem:[%s452] sm:$0xff]
        %v455 = vpack.c.bf16 %v454, %v454
        %v456 = vld [vmem:[%s1] sm:$0xf]
        %v457 = vld [vmem:[%s1 + $0x4] sm:$0xf]
        %v458 = vld [vmem:[%s1 + $0x8] sm:$0xf]
        %v459 = vld [vmem:[%s1 + $0xc] sm:$0xf]
        %v460 = vld [vmem:[%s2] sm:$0x1]
        %v462 = vperm.slane %v460, 0
        %v468 = vunpack.c.l.b16 %v456
        %v469 = vunpack.c.l.b16 %v457
        %v470 = vunpack.c.l.b16 %v458
        %v471 = vunpack.c.l.b16 %v459
        %v472 = vpack.c.b16 %v469, %v468
        %v473 = vpack.c.b16 %v471, %v470
        %vm476 = vcmask 261120
        %v478 = vsel %vm476, %v455, 0
        %480 = vmatpush.bf16.msra.mxu0 0
        %481 = vmatpush.bf16.msra.mxu0 0
        %482 = vmatpush.bf16.msra.mxu0 0
        %483 = vmatpush.bf16.msra.mxu0 0
        %484 = vmatpush.bf16.msra.mxu0 0
        %485 = vmatpush.bf16.msra.mxu0 0
        %486 = vmatpush.bf16.msra.mxu0 %v473
        %487 = vmatpush.bf16.msra.mxu0 %v472
        %488 = vmatmul.bf16.gmra.mxu0 %v478
        %v489 = vpop.f32.mrf.mxu0
        %v490 = vadd.f32 %v462, %v489
        %v491 = vpop.f32.mrf.mxu0
        %492 = vdwg.mxu0
        %v493 = vpack.c.bf16 %v490, %v490
        %495 = vrot.lane.b32.xlu0 %v493, 120
        %v496 = vpop.permute.xlu0 %495
        %497 = vrot.lane.b32.xlu0 %v493, 112
        %v498 = vpop.permute.xlu0 %497
        %499 = vrot.lane.b32.xlu0 %v493, 104
        %v500 = vpop.permute.xlu0 %499
        %v501 = vunpack.c.l.b16 %v493
        %v502 = vpack.c.b16 %v501, %v501
        %503 = vrot.lane.b32.xlu0 %v502, 96
        %v504 = vpop.permute.xlu0 %503
        %vm505 = vcmask 64512
        %v507 = vsel %vm505, %v493, 0
        %v510 = vsel %vm505, %v504, 0
        %512 = vmatpush.bf16.xpose.msra.mxu0 0
        %513 = vmatpush.bf16.xpose.msra.mxu0 0
        %514 = vmatpush.bf16.xpose.msra.mxu0 0
        %515 = vmatpush.bf16.xpose.msra.mxu0 0
        %516 = vmatpush.bf16.xpose.msra.mxu0 0
        %517 = vmatpush.bf16.xpose.msra.mxu0 0
        %518 = vmatpush.bf16.xpose.msra.mxu0 0
        %519 = vmatpush.bf16.xpose.msra.mxu0 %v510
        %520 = vmatmul.bf16.gmra.mxu0 %v507
        %v521 = vpop.f32.mrf.mxu0
        %v522 = vadd.f32 0.0, %v521
        %v523 = vpop.f32.mrf.mxu0
        %524 = vdwg.mxu0
        %v525 = vunpack.c.l.b16 %v496
        %v526 = vpack.c.b16 %v525, %v525
        %527 = vrot.lane.b32.xlu0 %v526, 96
        %v528 = vpop.permute.xlu0 %527
        %v530 = vsel %vm505, %v496, 0
        %v533 = vsel %vm505, %v528, 0
        %535 = vmatpush.bf16.xpose.msra.mxu0 0
        %536 = vmatpush.bf16.xpose.msra.mxu0 0
        %537 = vmatpush.bf16.xpose.msra.mxu0 0
        %538 = vmatpush.bf16.xpose.msra.mxu0 0
        %539 = vmatpush.bf16.xpose.msra.mxu0 0
        %540 = vmatpush.bf16.xpose.msra.mxu0 0
        %541 = vmatpush.bf16.xpose.msra.mxu0 0
        %542 = vmatpush.bf16.xpose.msra.mxu0 %v533
        %543 = vmatmul.bf16.gmra.mxu0 %v530
        %v544 = vpop.f32.mrf.mxu0
        %v545 = vadd.f32 0.0, %v544
        %v546 = vpop.f32.mrf.mxu0
        %547 = vdwg.mxu0
        %v548 = vunpack.c.l.b16 %v498
        %v549 = vpack.c.b16 %v548, %v548
        %550 = vrot.lane.b32.xlu0 %v549, 96
        %v551 = vpop.permute.xlu0 %550
        %v553 = vsel %vm505, %v498, 0
        %v556 = vsel %vm505, %v551, 0
        %558 = vmatpush.bf16.xpose.msra.mxu0 0
        %559 = vmatpush.bf16.xpose.msra.mxu0 0
        %560 = vmatpush.bf16.xpose.msra.mxu0 0
        %561 = vmatpush.bf16.xpose.msra.mxu0 0
        %562 = vmatpush.bf16.xpose.msra.mxu0 0
        %563 = vmatpush.bf16.xpose.msra.mxu0 0
        %564 = vmatpush.bf16.xpose.msra.mxu0 0
        %565 = vmatpush.bf16.xpose.msra.mxu0 %v556
        %566 = vmatmul.bf16.gmra.mxu0 %v553
        %v567 = vpop.f32.mrf.mxu0
        %v568 = vadd.f32 0.0, %v567
        %v569 = vpop.f32.mrf.mxu0
        %570 = vdwg.mxu0
        %v571 = vunpack.c.l.b16 %v500
        %v572 = vpack.c.b16 %v571, %v571
        %573 = vrot.lane.b32.xlu0 %v572, 96
        %v574 = vpop.permute.xlu0 %573
        %v576 = vsel %vm505, %v500, 0
        %v579 = vsel %vm505, %v574, 0
        %581 = vmatpush.bf16.xpose.msra.mxu0 0
        %582 = vmatpush.bf16.xpose.msra.mxu0 0
        %583 = vmatpush.bf16.xpose.msra.mxu0 0
        %584 = vmatpush.bf16.xpose.msra.mxu0 0
        %585 = vmatpush.bf16.xpose.msra.mxu0 0
        %586 = vmatpush.bf16.xpose.msra.mxu0 0
        %587 = vmatpush.bf16.xpose.msra.mxu0 0
        %588 = vmatpush.bf16.xpose.msra.mxu0 %v579
        %589 = vmatmul.bf16.gmra.mxu0 %v576
        %v590 = vpop.f32.mrf.mxu0
        %v591 = vadd.f32 0.0, %v590
        %v592 = vpop.f32.mrf.mxu0
        %593 = vdwg.mxu0
        %v594 = vlaneseq
        %v595 = vshrl.u32 %v594, 7
        %v596 = vlaneseq
        %v597 = vand.u32 %v596, 127
        %vm598 = vcmp.gt.s32.totalorder %v597, %v595
        %v599 = vsel %vm598, 1, 0
        %vm600 = vcmp.eq.s32.totalorder %v599, 1
        %v601 = vsel %vm600, -1e+30, %v522
        %v602 = vsel %vm600, -1e+30, %v545
        %v603 = vsel %vm600, -1e+30, %v568
        %v604 = vsel %vm600, -1e+30, %v591
        %v605 = vsel %vm505, %v601, -inf
        %606 = vmax.xlane.f32.xlu0 %v605
        %v607 = vpop.xlane.xlu0 %606
        %v608 = vsel %vm505, %v602, -inf
        %609 = vmax.xlane.f32.xlu0 %v608
        %v610 = vpop.xlane.xlu0 %609
        %v611 = vsel %vm505, %v603, -inf
        %612 = vmax.xlane.f32.xlu0 %v611
        %v613 = vpop.xlane.xlu0 %612
        %v614 = vsel %vm505, %v604, -inf
        %615 = vmax.xlane.f32.xlu0 %v614
        %v616 = vpop.xlane.xlu0 %615
        %v617 = vsub.f32 %v601, %v607
        %v618 = vsub.f32 %v602, %v610
        %v619 = vsub.f32 %v603, %v613
        %v620 = vsub.f32 %v604, %v616
        %v621 = vmul.f32 %v617, 1.442695
        %v622 = vpow.pop %v621
        %v623 = vmul.f32 %v618, 1.442695
        %v624 = vpow.pop %v623
        %v625 = vmul.f32 %v619, 1.442695
        %v626 = vpow.pop %v625
        %v627 = vmul.f32 %v620, 1.442695
        %v628 = vpow.pop %v627
        %v629 = vsel %vm505, %v622, 0.0
        %630 = vadd.xlane.f32.xlu0 %v629
        %v631 = vpop.xlane.xlu0 %630
        %v632 = vsel %vm505, %v624, 0.0
        %633 = vadd.xlane.f32.xlu0 %v632
        %v634 = vpop.xlane.xlu0 %633
        %v635 = vsel %vm505, %v626, 0.0
        %636 = vadd.xlane.f32.xlu0 %v635
        %v637 = vpop.xlane.xlu0 %636
        %v638 = vsel %vm505, %v628, 0.0
        %639 = vadd.xlane.f32.xlu0 %v638
        %v640 = vpop.xlane.xlu0 %639
        %v641 = vrcp.pop %v631
        %v642 = vrcp.pop %v634
        %v643 = vrcp.pop %v637
        %v644 = vrcp.pop %v640
        %v645 = vmul.f32 %v622, %v641
        %v646 = vmul.f32 %v624, %v642
        %v647 = vmul.f32 %v626, %v643
        %v648 = vmul.f32 %v628, %v644
        %v649 = vpack.c.bf16 %v645, %v645
        %v650 = vpack.c.bf16 %v646, %v646
        %v651 = vpack.c.bf16 %v647, %v647
        %v652 = vpack.c.bf16 %v648, %v648
        %653 = vrot.lane.b32.xlu0 %v502, 64
        %v654 = vpop.permute.xlu0 %653
        %v656 = vsel %vm505, %v649, 0
        %vm658 = vcmask 1043456
        %v660 = vsel %vm658, %v654, 0
        %662 = vmatpush.bf16.msra.mxu0 0
        %663 = vmatpush.bf16.msra.mxu0 0
        %664 = vmatpush.bf16.msra.mxu0 0
        %665 = vmatpush.bf16.msra.mxu0 0
        %666 = vmatpush.bf16.msra.mxu0 0
        %667 = vmatpush.bf16.msra.mxu0 0
        %668 = vmatpush.bf16.msra.mxu0 0
        %669 = vmatpush.bf16.msra.mxu0 %v660
        %670 = vmatmul.bf16.gmra.mxu0 %v656
        %v671 = vpop.f32.mrf.mxu0
        %v672 = vadd.f32 0.0, %v671
        %v673 = vpop.f32.mrf.mxu0
        %674 = vdwg.mxu0
        %675 = vrot.lane.b32.xlu0 %v526, 64
        %v676 = vpop.permute.xlu0 %675
        %v678 = vsel %vm505, %v650, 0
        %v681 = vsel %vm658, %v676, 0
        %683 = vmatpush.bf16.msra.mxu0 0
        %684 = vmatpush.bf16.msra.mxu0 0
        %685 = vmatpush.bf16.msra.mxu0 0
        %686 = vmatpush.bf16.msra.mxu0 0
        %687 = vmatpush.bf16.msra.mxu0 0
        %688 = vmatpush.bf16.msra.mxu0 0
        %689 = vmatpush.bf16.msra.mxu0 0
        %690 = vmatpush.bf16.msra.mxu0 %v681
        %691 = vmatmul.bf16.gmra.mxu0 %v678
        %v692 = vpop.f32.mrf.mxu0
        %v693 = vadd.f32 0.0, %v692
        %v694 = vpop.f32.mrf.mxu0
        %695 = vdwg.mxu0
        %696 = vrot.lane.b32.xlu0 %v549, 64
        %v697 = vpop.permute.xlu0 %696
        %v699 = vsel %vm505, %v651, 0
        %v702 = vsel %vm658, %v697, 0
        %704 = vmatpush.bf16.msra.mxu0 0
        %705 = vmatpush.bf16.msra.mxu0 0
        %706 = vmatpush.bf16.msra.mxu0 0
        %707 = vmatpush.bf16.msra.mxu0 0
        %708 = vmatpush.bf16.msra.mxu0 0
        %709 = vmatpush.bf16.msra.mxu0 0
        %710 = vmatpush.bf16.msra.mxu0 0
        %711 = vmatpush.bf16.msra.mxu0 %v702
        %712 = vmatmul.bf16.gmra.mxu0 %v699
        %v713 = vpop.f32.mrf.mxu0
        %v714 = vadd.f32 0.0, %v713
        %v715 = vpop.f32.mrf.mxu0
        %716 = vdwg.mxu0
        %717 = vrot.lane.b32.xlu0 %v572, 64
        %v718 = vpop.permute.xlu0 %717
        %v720 = vsel %vm505, %v652, 0
        %v723 = vsel %vm658, %v718, 0
        %725 = vmatpush.bf16.msra.mxu0 0
        %726 = vmatpush.bf16.msra.mxu0 0
        %727 = vmatpush.bf16.msra.mxu0 0
        %728 = vmatpush.bf16.msra.mxu0 0
        %729 = vmatpush.bf16.msra.mxu0 0
        %730 = vmatpush.bf16.msra.mxu0 0
        %731 = vmatpush.bf16.msra.mxu0 0
        %732 = vmatpush.bf16.msra.mxu0 %v723
        %733 = vmatmul.bf16.gmra.mxu0 %v720
        %v734 = vpop.f32.mrf.mxu0
        %v735 = vadd.f32 0.0, %v734
        %v736 = vpop.f32.mrf.mxu0
        %737 = vdwg.mxu0
        %v738 = vpack.c.bf16 %v672, %v672
        %v739 = vpack.c.bf16 %v693, %v693
        %v740 = vpack.c.bf16 %v714, %v714
        %v741 = vpack.c.bf16 %v735, %v735
        %v743 = vunpack.c.l.b16 %v739
        %v744 = vpack.c.b16 %v743, %v743
        %745 = vrot.lane.b32.xlu0 %v744, 8
        %v746 = vpop.permute.xlu0 %745
        %v748 = vunpack.c.l.b16 %v740
        %v749 = vpack.c.b16 %v748, %v748
        %750 = vrot.lane.b32.xlu0 %v749, 16
        %v751 = vpop.permute.xlu0 %750
        %v753 = vunpack.c.l.b16 %v741
        %v754 = vpack.c.b16 %v753, %v753
        %755 = vrot.lane.b32.xlu0 %v754, 24
        %v756 = vpop.permute.xlu0 %755
        %v759 = vsel %vm505, %v738, %v746
        %vm760 = vcmask 130048
        %v762 = vsel %vm760, %v759, %v751
        %vm763 = vcmask 195584
        %v765 = vsel %vm763, %v762, %v756
        %v766 = vld [vmem:[%s3] sm:$0xf]
        %v767 = vld [vmem:[%s3 + $0x4] sm:$0xf]
        %v768 = vld [vmem:[%s3 + $0x8] sm:$0xf]
        %v769 = vld [vmem:[%s3 + $0xc] sm:$0xf]
        %v770 = vld [vmem:[%s4] sm:$0x1]
        %v772 = vperm.slane %v770, 0
        %v778 = vunpack.c.l.b16 %v766
        %v779 = vunpack.c.l.b16 %v767
        %v780 = vunpack.c.l.b16 %v768
        %v781 = vunpack.c.l.b16 %v769
        %v782 = vpack.c.b16 %v779, %v778
        %v783 = vpack.c.b16 %v781, %v780
        %v786 = vsel %vm476, %v765, 0
        %788 = vmatpush.bf16.msra.mxu0 0
        %789 = vmatpush.bf16.msra.mxu0 0
        %790 = vmatpush.bf16.msra.mxu0 0
        %791 = vmatpush.bf16.msra.mxu0 0
        %792 = vmatpush.bf16.msra.mxu0 0
        %793 = vmatpush.bf16.msra.mxu0 0
        %794 = vmatpush.bf16.msra.mxu0 %v783
        %795 = vmatpush.bf16.msra.mxu0 %v782
        %796 = vmatmul.bf16.gmra.mxu0 %v786
        %v797 = vpop.f32.mrf.mxu0
        %v798 = vadd.f32 %v772, %v797
        %v799 = vpop.f32.mrf.mxu0
        %800 = vdwg.mxu0
        %v801 = vadd.f32 %v454, %v798
        %v802 = vsel %vm476, %v801, 0.0
        %803 = vadd.xlane.f32.xlu0 %v802
        %v804 = vpop.xlane.xlu0 %803
        %v805 = vrcp.pop 32.0
        %v806 = vmul.f32 32.0, %v805
        %v807 = vsub.f32 1.0, %v806
        %v808 = vmul.f32 %v805, %v807
        %v809 = vadd.f32 %v805, %v808
        %vm810 = vweird.f32 %v805
        %v811 = vsel %vm810, %v805, %v809
        %v812 = vmul.f32 %v804, %v811
        %v813 = vmul.f32 %v801, %v801
        %v814 = vsel %vm476, %v813, 0.0
        %815 = vadd.xlane.f32.xlu0 %v814
        %v816 = vpop.xlane.xlu0 %815
        %v817 = vmul.f32 %v816, %v811
        %v818 = vmul.f32 %v812, %v812
        %v819 = vsub.f32 %v817, %v818
        %v820 = vsub.f32 %v801, %v812
        %v821 = vadd.f32 %v819, 1e-05
        %v822 = vrsqrt.pop %v821
        %v823 = vmul.f32 %v822, %v821
        %v824 = vmul.f32 %v823, %v822
        %v825 = vmul.f32 0.5, %v824
        %v826 = vsub.f32 1.5, %v825
        %v827 = vmul.f32 %v822, %v826
        %vm828 = vweird.f32 %v821
        %vm829 = vweird.f32 %v822
        %vm830 = vmor %vm828, %vm829
        %v831 = vsel %vm830, %v822, %v827
        %v832 = vmul.f32 %v820, %v831
        %v833 = vld [vmem:[%s5] sm:$0x1]
        %v835 = vperm.slane %v833, 0
        %v837 = vmul.f32 %v832, %v835
        %v838 = vld [vmem:[%s6] sm:$0x1]
        %v840 = vperm.slane %v838, 0
        %v842 = vadd.f32 %v837, %v840
        %v843 = vpack.c.bf16 %v842, %v842
        %v844 = vld [vmem:[#allocation2] sm:$0xf]
        %v845 = vld [vmem:[#allocation2 + $0x4] sm:$0xf]
        %v846 = vld [vmem:[#allocation2 + $0x8] sm:$0xf]
        %v847 = vld [vmem:[#allocation2 + $0xc] sm:$0xf]
        %v848 = vld [vmem:[%s8] sm:$0x1]
        %v850 = vperm.slane %v848, 0
        %v856 = vunpack.c.l.b16 %v844
        %v857 = vunpack.c.l.b16 %v845
        %v858 = vunpack.c.l.b16 %v846
        %v859 = vunpack.c.l.b16 %v847
        %v860 = vpack.c.b16 %v857, %v856
        %v861 = vpack.c.b16 %v859, %v858
        %v865 = vsel %vm476, %v843, 0
        %867 = vmatpush.bf16.msra.mxu0 0
        %868 = vmatpush.bf16.msra.mxu0 0
        %869 = vmatpush.bf16.msra.mxu0 0
        %870 = vmatpush.bf16.msra.mxu0 0
        %871 = vmatpush.bf16.msra.mxu0 0
        %872 = vmatpush.bf16.msra.mxu0 0
        %873 = vmatpush.bf16.msra.mxu0 %v861
        %874 = vmatpush.bf16.msra.mxu0 %v860
        %875 = vmatmul.bf16.gmra.mxu0 %v865
        %v876 = vpop.f32.mrf.mxu0
        %v877 = vadd.f32 %v850, %v876
        %v878 = vpop.f32.mrf.mxu0
        %879 = vdwg.mxu0
        %v880 = vmax.f32 %v877, 0.0
        %v881 = vpack.c.bf16 %v880, %v880
        %v882 = vld [vmem:[%s9] sm:$0xf]
        %v883 = vld [vmem:[%s9 + $0x4] sm:$0xf]
        %v884 = vld [vmem:[%s9 + $0x8] sm:$0xf]
        %v885 = vld [vmem:[%s9 + $0xc] sm:$0xf]
        %v886 = vld [vmem:[%s9 + $0x10] sm:$0xf]
        %v887 = vld [vmem:[%s9 + $0x14] sm:$0xf]
        %v888 = vld [vmem:[%s9 + $0x18] sm:$0xf]
        %v889 = vld [vmem:[%s9 + $0x1c] sm:$0xf]
        %v890 = vld [vmem:[%s10] sm:$0x1]
        %v892 = vperm.slane %v890, 0
        %v902 = vunpack.c.l.b16 %v882
        %v903 = vunpack.c.l.b16 %v883
        %v904 = vunpack.c.l.b16 %v884
        %v905 = vunpack.c.l.b16 %v885
        %v906 = vunpack.c.l.b16 %v886
        %v907 = vunpack.c.l.b16 %v887
        %v908 = vunpack.c.l.b16 %v888
        %v909 = vunpack.c.l.b16 %v889
        %v910 = vpack.c.b16 %v903, %v902
        %v911 = vpack.c.b16 %v905, %v904
        %v912 = vpack.c.b16 %v907, %v906
        %v913 = vpack.c.b16 %v909, %v908
        %vm918 = vcmask 523264
        %v920 = vsel %vm918, %v881, 0
        %922 = vmatpush.bf16.msra.mxu0 0
        %923 = vmatpush.bf16.msra.mxu0 0
        %924 = vmatpush.bf16.msra.mxu0 0
        %925 = vmatpush.bf16.msra.mxu0 0
        %926 = vmatpush.bf16.msra.mxu0 %v913
        %927 = vmatpush.bf16.msra.mxu0 %v912
        %928 = vmatpush.bf16.msra.mxu0 %v911
        %929 = vmatpush.bf16.msra.mxu0 %v910
        %930 = vmatmul.bf16.gmra.mxu0 %v920
        %v931 = vpop.f32.mrf.mxu0
        %v932 = vadd.f32 %v892, %v931
        %v933 = vpop.f32.mrf.mxu0
        %934 = vdwg.mxu0
        %v935 = vadd.f32 %v842, %v932
        %v936 = vsel %vm476, %v935, 0.0
        %937 = vadd.xlane.f32.xlu0 %v936
        %v938 = vpop.xlane.xlu0 %937
        %v939 = vmul.f32 %v938, %v811
        %v940 = vmul.f32 %v935, %v935
        %v941 = vsel %vm476, %v940, 0.0
        %942 = vadd.xlane.f32.xlu0 %v941
        %v943 = vpop.xlane.xlu0 %942
        %v944 = vmul.f32 %v943, %v811
        %v945 = vmul.f32 %v939, %v939
        %v946 = vsub.f32 %v944, %v945
        %v947 = vsub.f32 %v935, %v939
        %v948 = vadd.f32 %v946, 1e-05
        %v949 = vrsqrt.pop %v948
        %v950 = vmul.f32 %v949, %v948
        %v951 = vmul.f32 %v950, %v949
        %v952 = vmul.f32 0.5, %v951
        %v953 = vsub.f32 1.5, %v952
        %v954 = vmul.f32 %v949, %v953
        %vm955 = vweird.f32 %v948
        %vm956 = vweird.f32 %v949
        %vm957 = vmor %vm955, %vm956
        %v958 = vsel %vm957, %v949, %v954
        %v959 = vmul.f32 %v947, %v958
        %v960 = vld [vmem:[%s11] sm:$0x1]
        %v962 = vperm.slane %v960, 0
        %v964 = vmul.f32 %v959, %v962
        %v965 = vld [vmem:[%s12] sm:$0x1]
        %v967 = vperm.slane %v965, 0
        %v969 = vadd.f32 %v964, %v967
        %970 = vst.msk [vmem:[%s448] sm:$0xff] %vm476, %v969
        %s971 = sand.u32 %s314, 1
        %s972 = scalar_lea.sflag [#allocation4], %s971
        %s973 = sand.u32 %s314, 1
        %s974 = smul.addr %s973, 8
        %s975 = scalar_lea.vmem [#allocation5], %s974
        // Predicated region
        $region77: #{tpu_custom_call.1} parent=71 // pred_check
          %p976 = pneg %p324
        $region78: #{tpu_custom_call.1} parent=71 // pred_check_branch
          %978 = sbr.rel (%p976) target = $region80
        $region79: #{tpu_custom_call.1} parent=71 // pred_region
          %980 = vsyncadd %s972, 0
          %s981 = smul.addr %s28, 8
          %s982 = scalar_lea.hbm %s13, %s981
          %s984 = sshll.u32 %s975, 4
          %s985 = int_to_ptr.vmem [resolvable:$true] %s984
          %s986 = sshll.u32 %s982, 4
          %s987 = int_to_ptr.hbm [resolvable:$true] %s986
          %989 = dma.vmem_to_hbm [thread:$0]  %s985, 128, %s987, %s972
        $region80: #{tpu_custom_call.1} parent=71 // pred_fallthru
          _
      $region72: #{tpu_custom_call.1} parent=5 // pred_fallthru
        _
      %p990 = scmp.le.s32.totalorder 2, %s23
      // Predicated region
      $region81: #{tpu_custom_call.1} parent=5 // pred_check
        %p991 = pneg %p990
      $region82: #{tpu_custom_call.1} parent=5 // pred_check_branch
        %993 = sbr.rel (%p991) target = $region84
      $region83: #{tpu_custom_call.1} parent=5 // pred_region
        %s994 = ssub.s32 %s23, 2
        // Predicated region
        $region85: #{tpu_custom_call.1} parent=83 // pred_check
          %p995 = pneg %p330
        $region86: #{tpu_custom_call.1} parent=83 // pred_check_branch
          %997 = sbr.rel (%p995) target = $region88
        $region87: #{tpu_custom_call.1} parent=83 // pred_region
          %s998 = sand.u32 %s315, 1
          %s999 = scalar_lea.sflag [#allocation4], %s998
          %s1000 = sand.u32 %s315, 1
          %s1001 = smul.addr %s1000, 8
          %s1002 = scalar_lea.vmem [#allocation5], %s1001
          %1004 = dma.done %s999, 128
        $region88: #{tpu_custom_call.1} parent=83 // pred_fallthru
          _
      $region84: #{tpu_custom_call.1} parent=5 // pred_fallthru
        _
    $region6: #{tpu_custom_call.1} parent=1 // loop_footer
      %s27 = sadd.s32 1, %s23
    $region7: #{tpu_custom_call.1} parent=1 // loop_footer_branch
      %22 = sbr.rel target = $region3
    $region8: #{tpu_custom_call.1} parent=1 // loop_exit
      _
    %1005 = vsyncpa [#allocation3], 1
    %s1006 = scalar_lea.sflag [#allocation3], 1
    %1007 = vsyncpa %s1006, 1
    %1008 = vsyncpa [#allocation4], 1
    %s1009 = scalar_lea.sflag [#allocation4], 1
    %1010 = vsyncpa %s1009, 1

// kernel: tpu_custom_call.1
$region0: #{tpu_custom_call.1}
  #allocation0 [shape = 'u32[]', space=smem, size = 0x4, offset = 0x4, fixed_abs, tag = 'smem constant byte address 0x4 - core index']
  #allocation1 [shape = 'u32[72,128]{1,0:T(1,128)}', space=vmem, size = 0x9000, scoped, tag = 'internal scratch']
  %s0 = inlined_call_operand.vmem [shape: f32[2,8,32], index: 0, kind: input, shape index: {}]
  %s1 = inlined_call_operand.vmem [shape: bf16[32,96], index: 1, kind: input, shape index: {}]
  %s2 = inlined_call_operand.vmem [shape: f32[1,96], index: 2, kind: input, shape index: {}]
  %s3 = inlined_call_operand.vmem [shape: bf16[32,32], index: 3, kind: input, shape index: {}]
  %s4 = inlined_call_operand.vmem [shape: f32[1,32], index: 4, kind: input, shape index: {}]
  %s5 = inlined_call_operand.vmem [shape: f32[1,32], index: 5, kind: input, shape index: {}]
  %s6 = inlined_call_operand.vmem [shape: f32[1,32], index: 6, kind: input, shape index: {}]
  %s7 = inlined_call_operand.hbm [shape: bf16[32,64], index: 7, kind: input, shape index: {}]
  %s8 = inlined_call_operand.vmem [shape: f32[1,64], index: 8, kind: input, shape index: {}]
  %s9 = inlined_call_operand.vmem [shape: bf16[64,32], index: 9, kind: input, shape index: {}]
  %s10 = inlined_call_operand.vmem [shape: f32[1,32], index: 10, kind: input, shape index: {}]
  %s11 = inlined_call_operand.vmem [shape: f32[1,32], index: 11, kind: input, shape index: {}]
  %s12 = inlined_call_operand.vmem [shape: f32[1,32], index: 12, kind: input, shape index: {}]
  %s13 = inlined_call_operand.hbm [shape: f32[2,8,32], index: 13, kind: output, shape index: {}]
  %s14 = sld [smem:[#allocation0]]
  $region89: #{tpu_custom_call.1} parent=0
    _
  %s16 = ssub.s32 1, %s14
  %s17 = scalar_select 0, %s16, %s14
  $region1: #{tpu_custom_call.1} parent=0
    #allocation2 [shape = 'u8[8192]{0}', space=vmem, size = 0x2000, scoped, tag = 'input window, operand 7, single buffered']
    #allocation3 [shape = 's32[2]{0}', space=sflag, size = 0x8, scoped, tag = 'scoped memory for tpu_custom_call.1']
    #allocation4 [shape = 's32[2]{0}', space=sflag, size = 0x8, scoped, tag = 'scoped memory for tpu_custom_call.1']
    #allocation5 [shape = 'u8[8192]{0}', space=vmem, size = 0x2000, scoped, tag = 'output window, operand 0']
    %18 = vsyncpa [#allocation3], 0
    %19 = vsyncpa [#allocation4], 0
    %s20 = scalar_lea.sflag [#allocation4], 1
    %21 = vsyncpa %s20, 0
    loop: start=0, step=1, limit=4
    $region2: #{tpu_custom_call.1} parent=1 // loop_pre_header
      _
    $region3: #{tpu_custom_call.1} parent=1 // loop_header
      %s23 = sphi 0, %s27
      %p24 = scmp.ge.s32.totalorder %s23, 4
      %s33 = sphi 0, %s35
      %s36 = sphi 0, %s33
      %s37 = sphi 0, %s36
      %s53 = sphi 0, %s37
      %s57 = sphi 0, %s57
      %s59 = sphi 0, %s57
      %s60 = sphi 0, %s59
      %s74 = sphi 0, %s60
      %s78 = sphi 0, %s78
      %s80 = sphi 0, %s78
      %s81 = sphi 0, %s80
      %s95 = sphi 0, %s81
      %s99 = sphi 0, %s99
      %s101 = sphi 0, %s99
      %s102 = sphi 0, %s101
      %s116 = sphi 0, %s102
      %s120 = sphi 0, %s120
      %s122 = sphi 0, %s120
      %s123 = sphi 0, %s122
      %s137 = sphi 0, %s123
      %s141 = sphi 0, %s141
      %s143 = sphi 0, %s141
      %s144 = sphi 0, %s143
      %s158 = sphi 0, %s144
      %s162 = sphi 0, %s162
      %s164 = sphi 0, %s162
      %s165 = sphi 0, %s164
      %s179 = sphi 0, %s165
      %s183 = sphi 0, %s183
      %s185 = sphi 0, %s183
      %s186 = sphi 0, %s185
      %s200 = sphi 0, %s186
      %s204 = sphi 0, %s204
      %s206 = sphi 0, %s204
      %s207 = sphi 0, %s206
      %s221 = sphi 0, %s207
      %s225 = sphi 0, %s225
      %s227 = sphi 0, %s225
      %s228 = sphi 0, %s227
      %s242 = sphi 0, %s228
      %s246 = sphi 0, %s246
      %s248 = sphi 0, %s246
      %s249 = sphi 0, %s248
      %s263 = sphi 0, %s249
      %s267 = sphi 0, %s267
      %s269 = sphi 0, %s267
      %s270 = sphi 0, %s269
      %s284 = sphi 0, %s270
      %s288 = sphi 0, %s288
      %s290 = sphi 0, %s288
      %s291 = sphi 0, %s290
      %s305 = sphi 0, %s291
      %s311 = sphi 0, %s313
      %s314 = sphi 0, %s311
      %s315 = sphi 0, %s314
      %s331 = sphi 0, %s315
    $region4: #{tpu_custom_call.1} parent=1 // loop_header_branch
      %26 = sbr.rel (%p24) target = $region8
    $region5: #{tpu_custom_call.1} parent=1 // loop_body
      %s28 = ssub.s32 %s23, 1
      %s29 = ssub.s32 %s23, 2
      %s30 = sadd.s32 %s23, 1
      %s31 = ssub.s32 %s23, %s30
      %p32 = scmp.eq.s32.totalorder %s31, 0
      %s34 = sadd.s32 %s33, 1
      %s35 = scalar_select %p32, %s33, %s34
      %p38 = pneg %p32
      %p39 = scmp.eq.s32.totalorder %s23, 1
      %p40 = por %p38, %p39
      %p41 = scmp.ne.s32.totalorder %s33, %s36
      %p42 = scmp.eq.s32.totalorder %s23, 0
      %p43 = por %p41, %p42
      %p44 = scmp.ne.s32.totalorder %s33, %s36
      %p45 = scmp.eq.s32.totalorder %s28, 1
      %p46 = por %p44, %p45
      %p47 = scmp.ne.s32.totalorder %s36, %s37
      %p48 = scmp.eq.s32.totalorder %s28, 0
      %p49 = por %p47, %p48
      %p50 = scmp.ne.s32.totalorder %s36, %s37
      %p51 = scmp.eq.s32.totalorder %s29, 1
      %p52 = por %p50, %p51
      %p54 = scmp.ne.s32.totalorder %s37, %s53
      %p55 = scmp.eq.s32.totalorder %s29, 0
      %p56 = por %p54, %p55
      %s58 = sadd.s32 %s57, 1
      %p61 = scmp.eq.s32.totalorder %s23, 1
      %p62 = scmp.ne.s32.totalorder %s57, %s59
      %p63 = scmp.eq.s32.totalorder %s23, 0
      %p64 = por %p62, %p63
      %p65 = scmp.ne.s32.totalorder %s57, %s59
      %p66 = scmp.eq.s32.totalorder %s28, 1
      %p67 = por %p65, %p66
      %p68 = scmp.ne.s32.totalorder %s59, %s60
      %p69 = scmp.eq.s32.totalorder %s28, 0
      %p70 = por %p68, %p69
      %p71 = scmp.ne.s32.totalorder %s59, %s60
      %p72 = scmp.eq.s32.totalorder %s29, 1
      %p73 = por %p71, %p72
      %p75 = scmp.ne.s32.totalorder %s60, %s74
      %p76 = scmp.eq.s32.totalorder %s29, 0
      %p77 = por %p75, %p76
      %s79 = sadd.s32 %s78, 1
      %p82 = scmp.eq.s32.totalorder %s23, 1
      %p83 = scmp.ne.s32.totalorder %s78, %s80
      %p84 = scmp.eq.s32.totalorder %s23, 0
      %p85 = por %p83, %p84
      %p86 = scmp.ne.s32.totalorder %s78, %s80
      %p87 = scmp.eq.s32.totalorder %s28, 1
      %p88 = por %p86, %p87
      %p89 = scmp.ne.s32.totalorder %s80, %s81
      %p90 = scmp.eq.s32.totalorder %s28, 0
      %p91 = por %p89, %p90
      %p92 = scmp.ne.s32.totalorder %s80, %s81
      %p93 = scmp.eq.s32.totalorder %s29, 1
      %p94 = por %p92, %p93
      %p96 = scmp.ne.s32.totalorder %s81, %s95
      %p97 = scmp.eq.s32.totalorder %s29, 0
      %p98 = por %p96, %p97
      %s100 = sadd.s32 %s99, 1
      %p103 = scmp.eq.s32.totalorder %s23, 1
      %p104 = scmp.ne.s32.totalorder %s99, %s101
      %p105 = scmp.eq.s32.totalorder %s23, 0
      %p106 = por %p104, %p105
      %p107 = scmp.ne.s32.totalorder %s99, %s101
      %p108 = scmp.eq.s32.totalorder %s28, 1
      %p109 = por %p107, %p108
      %p110 = scmp.ne.s32.totalorder %s101, %s102
      %p111 = scmp.eq.s32.totalorder %s28, 0
      %p112 = por %p110, %p111
      %p113 = scmp.ne.s32.totalorder %s101, %s102
      %p114 = scmp.eq.s32.totalorder %s29, 1
      %p115 = por %p113, %p114
      %p117 = scmp.ne.s32.totalorder %s102, %s116
      %p118 = scmp.eq.s32.totalorder %s29, 0
      %p119 = por %p117, %p118
      %s121 = sadd.s32 %s120, 1
      %p124 = scmp.eq.s32.totalorder %s23, 1
      %p125 = scmp.ne.s32.totalorder %s120, %s122
      %p126 = scmp.eq.s32.totalorder %s23, 0
      %p127 = por %p125, %p126
      %p128 = scmp.ne.s32.totalorder %s120, %s122
      %p129 = scmp.eq.s32.totalorder %s28, 1
      %p130 = por %p128, %p129
      %p131 = scmp.ne.s32.totalorder %s122, %s123
      %p132 = scmp.eq.s32.totalorder %s28, 0
      %p133 = por %p131, %p132
      %p134 = scmp.ne.s32.totalorder %s122, %s123
      %p135 = scmp.eq.s32.totalorder %s29, 1
      %p136 = por %p134, %p135
      %p138 = scmp.ne.s32.totalorder %s123, %s137
      %p139 = scmp.eq.s32.totalorder %s29, 0
      %p140 = por %p138, %p139
      %s142 = sadd.s32 %s141, 1
      %p145 = scmp.eq.s32.totalorder %s23, 1
      %p146 = scmp.ne.s32.totalorder %s141, %s143
      %p147 = scmp.eq.s32.totalorder %s23, 0
      %p148 = por %p146, %p147
      %p149 = scmp.ne.s32.totalorder %s141, %s143
      %p150 = scmp.eq.s32.totalorder %s28, 1
      %p151 = por %p149, %p150
      %p152 = scmp.ne.s32.totalorder %s143, %s144
      %p153 = scmp.eq.s32.totalorder %s28, 0
      %p154 = por %p152, %p153
      %p155 = scmp.ne.s32.totalorder %s143, %s144
      %p156 = scmp.eq.s32.totalorder %s29, 1
      %p157 = por %p155, %p156
      %p159 = scmp.ne.s32.totalorder %s144, %s158
      %p160 = scmp.eq.s32.totalorder %s29, 0
      %p161 = por %p159, %p160
      %s163 = sadd.s32 %s162, 1
      %p166 = scmp.eq.s32.totalorder %s23, 1
      %p167 = scmp.ne.s32.totalorder %s162, %s164
      %p168 = scmp.eq.s32.totalorder %s23, 0
      %p169 = por %p167, %p168
      %p170 = scmp.ne.s32.totalorder %s162, %s164
      %p171 = scmp.eq.s32.totalorder %s28, 1
      %p172 = por %p170, %p171
      %p173 = scmp.ne.s32.totalorder %s164, %s165
      %p174 = scmp.eq.s32.totalorder %s28, 0
      %p175 = por %p173, %p174
      %p176 = scmp.ne.s32.totalorder %s164, %s165
      %p177 = scmp.eq.s32.totalorder %s29, 1
      %p178 = por %p176, %p177
      %p180 = scmp.ne.s32.totalorder %s165, %s179
      %p181 = scmp.eq.s32.totalorder %s29, 0
      %p182 = por %p180, %p181
      %s184 = sadd.s32 %s183, 1
      %p187 = scmp.eq.s32.totalorder %s23, 1
      %p188 = scmp.ne.s32.totalorder %s183, %s185
      %p189 = scmp.eq.s32.totalorder %s23, 0
      %p190 = por %p188, %p189
      %p191 = scmp.ne.s32.totalorder %s183, %s185
      %p192 = scmp.eq.s32.totalorder %s28, 1
      %p193 = por %p191, %p192
      %p194 = scmp.ne.s32.totalorder %s185, %s186
      %p195 = scmp.eq.s32.totalorder %s28, 0
      %p196 = por %p194, %p195
      %p197 = scmp.ne.s32.totalorder %s185, %s186
      %p198 = scmp.eq.s32.totalorder %s29, 1
      %p199 = por %p197, %p198
      %p201 = scmp.ne.s32.totalorder %s186, %s200
      %p202 = scmp.eq.s32.totalorder %s29, 0
      %p203 = por %p201, %p202
      %s205 = sadd.s32 %s204, 1
      %p208 = scmp.eq.s32.totalorder %s23, 1
      %p209 = scmp.ne.s32.totalorder %s204, %s206
      %p210 = scmp.eq.s32.totalorder %s23, 0
      %p211 = por %p209, %p210
      %p212 = scmp.ne.s32.totalorder %s204, %s206
      %p213 = scmp.eq.s32.totalorder %s28, 1
      %p214 = por %p212, %p213
      %p215 = scmp.ne.s32.totalorder %s206, %s207
      %p216 = scmp.eq.s32.totalorder %s28, 0
      %p217 = por %p215, %p216
      %p218 = scmp.ne.s32.totalorder %s206, %s207
      %p219 = scmp.eq.s32.totalorder %s29, 1
      %p220 = por %p218, %p219
      %p222 = scmp.ne.s32.totalorder %s207, %s221
      %p223 = scmp.eq.s32.totalorder %s29, 0
      %p224 = por %p222, %p223
      %s226 = sadd.s32 %s225, 1
      %p229 = scmp.eq.s32.totalorder %s23, 1
      %p230 = scmp.ne.s32.totalorder %s225, %s227
      %p231 = scmp.eq.s32.totalorder %s23, 0
      %p232 = por %p230, %p231
      %p233 = scmp.ne.s32.totalorder %s225, %s227
      %p234 = scmp.eq.s32.totalorder %s28, 1
      %p235 = por %p233, %p234
      %p236 = scmp.ne.s32.totalorder %s227, %s228
      %p237 = scmp.eq.s32.totalorder %s28, 0
      %p238 = por %p236, %p237
      %p239 = scmp.ne.s32.totalorder %s227, %s228
      %p240 = scmp.eq.s32.totalorder %s29, 1
      %p241 = por %p239, %p240
      %p243 = scmp.ne.s32.totalorder %s228, %s242
      %p244 = scmp.eq.s32.totalorder %s29, 0
      %p245 = por %p243, %p244
      %s247 = sadd.s32 %s246, 1
      %p250 = scmp.eq.s32.totalorder %s23, 1
      %p251 = scmp.ne.s32.totalorder %s246, %s248
      %p252 = scmp.eq.s32.totalorder %s23, 0
      %p253 = por %p251, %p252
      %p254 = scmp.ne.s32.totalorder %s246, %s248
      %p255 = scmp.eq.s32.totalorder %s28, 1
      %p256 = por %p254, %p255
      %p257 = scmp.ne.s32.totalorder %s248, %s249
      %p258 = scmp.eq.s32.totalorder %s28, 0
      %p259 = por %p257, %p258
      %p260 = scmp.ne.s32.totalorder %s248, %s249
      %p261 = scmp.eq.s32.totalorder %s29, 1
      %p262 = por %p260, %p261
      %p264 = scmp.ne.s32.totalorder %s249, %s263
      %p265 = scmp.eq.s32.totalorder %s29, 0
      %p266 = por %p264, %p265
      %s268 = sadd.s32 %s267, 1
      %p271 = scmp.eq.s32.totalorder %s23, 1
      %p272 = scmp.ne.s32.totalorder %s267, %s269
      %p273 = scmp.eq.s32.totalorder %s23, 0
      %p274 = por %p272, %p273
      %p275 = scmp.ne.s32.totalorder %s267, %s269
      %p276 = scmp.eq.s32.totalorder %s28, 1
      %p277 = por %p275, %p276
      %p278 = scmp.ne.s32.totalorder %s269, %s270
      %p279 = scmp.eq.s32.totalorder %s28, 0
      %p280 = por %p278, %p279
      %p281 = scmp.ne.s32.totalorder %s269, %s270
      %p282 = scmp.eq.s32.totalorder %s29, 1
      %p283 = por %p281, %p282
      %p285 = scmp.ne.s32.totalorder %s270, %s284
      %p286 = scmp.eq.s32.totalorder %s29, 0
      %p287 = por %p285, %p286
      %s289 = sadd.s32 %s288, 1
      %p292 = scmp.eq.s32.totalorder %s23, 1
      %p293 = scmp.ne.s32.totalorder %s288, %s290
      %p294 = scmp.eq.s32.totalorder %s23, 0
      %p295 = por %p293, %p294
      %p296 = scmp.ne.s32.totalorder %s288, %s290
      %p297 = scmp.eq.s32.totalorder %s28, 1
      %p298 = por %p296, %p297
      %p299 = scmp.ne.s32.totalorder %s290, %s291
      %p300 = scmp.eq.s32.totalorder %s28, 0
      %p301 = por %p299, %p300
      %p302 = scmp.ne.s32.totalorder %s290, %s291
      %p303 = scmp.eq.s32.totalorder %s29, 1
      %p304 = por %p302, %p303
      %p306 = scmp.ne.s32.totalorder %s291, %s305
      %p307 = scmp.eq.s32.totalorder %s29, 0
      %p308 = por %p306, %p307
      %s309 = ssub.s32 %s23, %s30
      %p310 = scmp.eq.s32.totalorder %s309, 0
      %s312 = sadd.s32 %s311, 1
      %s313 = scalar_select %p310, %s311, %s312
      %p316 = pneg %p310
      %p317 = scmp.eq.s32.totalorder %s23, 1
      %p318 = por %p316, %p317
      %p319 = scmp.ne.s32.totalorder %s311, %s314
      %p320 = scmp.eq.s32.totalorder %s23, 0
      %p321 = por %p319, %p320
      %p322 = scmp.ne.s32.totalorder %s311, %s314
      %p323 = scmp.eq.s32.totalorder %s28, 1
      %p324 = por %p322, %p323
      %p325 = scmp.ne.s32.totalorder %s314, %s315
      %p326 = scmp.eq.s32.totalorder %s28, 0
      %p327 = por %p325, %p326
      %p328 = scmp.ne.s32.totalorder %s314, %s315
      %p329 = scmp.eq.s32.totalorder %s29, 1
      %p330 = por %p328, %p329
      %p332 = scmp.ne.s32.totalorder %s315, %s331
      %p333 = scmp.eq.s32.totalorder %s29, 0
      %p334 = por %p332, %p333
      %p335 = scmp.le.s32.totalorder 1, %s23
      %p336 = scmp.lt.s32.totalorder %s23, 3
      %p337 = pnand %p335, %p336
      %p338 = pneg %p337
      // Predicated region
      $region9: #{tpu_custom_call.1} parent=5 // pred_check
        _
      $region10: #{tpu_custom_call.1} parent=5 // pred_check_branch
        %340 = sbr.rel (%p337) target = $region12
      $region11: #{tpu_custom_call.1} parent=5 // pred_region
        %s341 = ssub.s32 %s23, 1
        // Predicated region
        $region13: #{tpu_custom_call.1} parent=11 // pred_check
          %p342 = pneg %p70
        $region14: #{tpu_custom_call.1} parent=11 // pred_check_branch
          %344 = sbr.rel (%p342) target = $region16
        $region15: #{tpu_custom_call.1} parent=11 // pred_region
          _
        $region16: #{tpu_custom_call.1} parent=11 // pred_fallthru
          _
        // Predicated region
        $region17: #{tpu_custom_call.1} parent=11 // pred_check
          %p345 = pneg %p91
        $region18: #{tpu_custom_call.1} parent=11 // pred_check_branch
          %347 = sbr.rel (%p345) target = $region20
        $region19: #{tpu_custom_call.1} parent=11 // pred_region
          _
        $region20: #{tpu_custom_call.1} parent=11 // pred_fallthru
          _
        // Predicated region
        $region21: #{tpu_custom_call.1} parent=11 // pred_check
          %p348 = pneg %p112
        $region22: #{tpu_custom_call.1} parent=11 // pred_check_branch
          %350 = sbr.rel (%p348) target = $region24
        $region23: #{tpu_custom_call.1} parent=11 // pred_region
          _
        $region24: #{tpu_custom_call.1} parent=11 // pred_fallthru
          _
        // Predicated region
        $region25: #{tpu_custom_call.1} parent=11 // pred_check
          %p351 = pneg %p133
        $region26: #{tpu_custom_call.1} parent=11 // pred_check_branch
          %353 = sbr.rel (%p351) target = $region28
        $region27: #{tpu_custom_call.1} parent=11 // pred_region
          _
        $region28: #{tpu_custom_call.1} parent=11 // pred_fallthru
          _
        // Predicated region
        $region29: #{tpu_custom_call.1} parent=11 // pred_check
          %p354 = pneg %p154
        $region30: #{tpu_custom_call.1} parent=11 // pred_check_branch
          %356 = sbr.rel (%p354) target = $region32
        $region31: #{tpu_custom_call.1} parent=11 // pred_region
          _
        $region32: #{tpu_custom_call.1} parent=11 // pred_fallthru
          _
        // Predicated region
        $region33: #{tpu_custom_call.1} parent=11 // pred_check
          %p357 = pneg %p175
        $region34: #{tpu_custom_call.1} parent=11 // pred_check_branch
          %359 = sbr.rel (%p357) target = $region36
        $region35: #{tpu_custom_call.1} parent=11 // pred_region
          _
        $region36: #{tpu_custom_call.1} parent=11 // pred_fallthru
          _
        // Predicated region
        $region37: #{tpu_custom_call.1} parent=11 // pred_check
          %p360 = pneg %p196
        $region38: #{tpu_custom_call.1} parent=11 // pred_check_branch
          %362 = sbr.rel (%p360) target = $region40
        $region39: #{tpu_custom_call.1} parent=11 // pred_region
          %364 = vsyncadd [#allocation3], 0
          %s365 = sshll.u32 %s7, 4
          %s366 = int_to_ptr.hbm [resolvable:$true] %s365
          %s367 = sshll.u32 [#allocation2], 4
          %s368 = int_to_ptr.vmem [resolvable:$true] %s367
          %373 = dma.hbm_to_vmem [thread:$0]  %s366, 256, %s368, [#allocation3], 64, 64, 4
        $region40: #{tpu_custom_call.1} parent=11 // pred_fallthru
          _
        // Predicated region
        $region41: #{tpu_custom_call.1} parent=11 // pred_check
          %p374 = pneg %p217
        $region42: #{tpu_custom_call.1} parent=11 // pred_check_branch
          %376 = sbr.rel (%p374) target = $region44
        $region43: #{tpu_custom_call.1} parent=11 // pred_region
          _
        $region44: #{tpu_custom_call.1} parent=11 // pred_fallthru
          _
        // Predicated region
        $region45: #{tpu_custom_call.1} parent=11 // pred_check
          %p377 = pneg %p238
        $region46: #{tpu_custom_call.1} parent=11 // pred_check_branch
          %379 = sbr.rel (%p377) target = $region48
        $region47: #{tpu_custom_call.1} parent=11 // pred_region
          _
        $region48: #{tpu_custom_call.1} parent=11 // pred_fallthru
          _
        // Predicated region
        $region49: #{tpu_custom_call.1} parent=11 // pred_check
          %p380 = pneg %p259
        $region50: #{tpu_custom_call.1} parent=11 // pred_check_branch
          %382 = sbr.rel (%p380) target = $region52
        $region51: #{tpu_custom_call.1} parent=11 // pred_region
          _
        $region52: #{tpu_custom_call.1} parent=11 // pred_fallthru
          _
        // Predicated region
        $region53: #{tpu_custom_call.1} parent=11 // pred_check
          %p383 = pneg %p280
        $region54: #{tpu_custom_call.1} parent=11 // pred_check_branch
          %385 = sbr.rel (%p383) target = $region56
        $region55: #{tpu_custom_call.1} parent=11 // pred_region
          _
        $region56: #{tpu_custom_call.1} parent=11 // pred_fallthru
          _
        // Predicated region
        $region57: #{tpu_custom_call.1} parent=11 // pred_check
          %p386 = pneg %p301
        $region58: #{tpu_custom_call.1} parent=11 // pred_check_branch
          %388 = sbr.rel (%p386) target = $region60
        $region59: #{tpu_custom_call.1} parent=11 // pred_region
          _
        $region60: #{tpu_custom_call.1} parent=11 // pred_fallthru
          _
      $region12: #{tpu_custom_call.1} parent=5 // pred_fallthru
        _
      %p389 = scmp.lt.s32.totalorder %s23, 2
      // Predicated region
      $region61: #{tpu_custom_call.1} parent=5 // pred_check
        %p390 = pneg %p389
      $region62: #{tpu_custom_call.1} parent=5 // pred_check_branch
        %392 = sbr.rel (%p390) target = $region64
      $region63: #{tpu_custom_call.1} parent=5 // pred_region
        // Predicated region
        $region65: #{tpu_custom_call.1} parent=63 // pred_check
          %p393 = pneg %p43
        $region66: #{tpu_custom_call.1} parent=63 // pred_check_branch
          %395 = sbr.rel (%p393) target = $region68
        $region67: #{tpu_custom_call.1} parent=63 // pred_region
          %p396 = scmp.lt.s32.totalorder %s23, 1
          %s397 = scalar_select %p396, %s23, 1
          %s398 = smul.addr %s397, 8
          %s399 = scalar_lea.vmem %s0, %s398
        $region68: #{tpu_custom_call.1} parent=63 // pred_fallthru
          _
      $region64: #{tpu_custom_call.1} parent=5 // pred_fallthru
        _
      %p400 = scmp.le.s32.totalorder 1, %s23
      %p401 = scmp.lt.s32.totalorder %s23, 3
      %p402 = pnand %p400, %p401
      %p403 = pneg %p402
      // Predicated region
      $region69: #{tpu_custom_call.1} parent=5 // pred_check
        _
      $region70: #{tpu_custom_call.1} parent=5 // pred_check_branch
        %405 = sbr.rel (%p402) target = $region72
      $region71: #{tpu_custom_call.1} parent=5 // pred_region
        %s406 = ssub.s32 %s23, 1
        // Predicated region
        $region73: #{tpu_custom_call.1} parent=71 // pred_check
          %p407 = pneg %p196
        $region74: #{tpu_custom_call.1} parent=71 // pred_check_branch
          %409 = sbr.rel (%p407) target = $region76
        $region75: #{tpu_custom_call.1} parent=71 // pred_region
          %411 = dma.done [#allocation3], 256
        $region76: #{tpu_custom_call.1} parent=71 // pred_fallthru
          _
        %p412 = scmp.lt.s32.totalorder %s28, 1
        %s413 = scalar_select %p412, %s28, 1
        %s414 = smul.addr %s413, 8
        %s415 = scalar_lea.vmem %s0, %s414
        %p416 = pneg %p49
        %p417 = pneg %p46
        %p418 = pneg %p70
        %p419 = pneg %p67
        %p420 = pneg %p91
        %p421 = pneg %p88
        %p422 = pneg %p112
        %p423 = pneg %p109
        %p424 = pneg %p133
        %p425 = pneg %p130
        %p426 = pneg %p154
        %p427 = pneg %p151
        %p428 = pneg %p175
        %p429 = pneg %p172
        %p430 = pneg %p196
        %p431 = pneg %p193
        %p432 = pneg %p217
        %p433 = pneg %p214
        %p434 = pneg %p238
        %p435 = pneg %p235
        %p436 = pneg %p259
        %p437 = pneg %p256
        %p438 = pneg %p280
        %p439 = pneg %p277
        %p440 = pneg %p301
        %p441 = pneg %p298
        %p442 = pneg %p327
        %p443 = pneg %p324
        %s444 = sand.u32 %s314, 1
        %s445 = scalar_lea.sflag [#allocation4], %s444
        %s446 = sand.u32 %s314, 1
        %s447 = smul.addr %s446, 8
        %s448 = scalar_lea.vmem [#allocation5], %s447
        %p449 = scmp.lt.s32.totalorder %s28, 1
        %s450 = scalar_select %p449, %s28, 1
        %s451 = smul.addr %s450, 8
        %s452 = scalar_lea.vmem %s0, %s451
        %v454 = vld [vmem:[%s452] sm:$0xff]
        %v455 = vpack.c.bf16 %v454, %v454
        %v456 = vld [vmem:[%s1] sm:$0xf]
        %v457 = vld [vmem:[%s1 + $0x4] sm:$0xf]
        %v458 = vld [vmem:[%s1 + $0x8] sm:$0xf]
        %v459 = vld [vmem:[%s1 + $0xc] sm:$0xf]
        %v460 = vld [vmem:[%s2] sm:$0x1]
        %v462 = vperm.slane %v460, 0
        %v468 = vunpack.c.l.b16 %v456
        %v469 = vunpack.c.l.b16 %v457
        %v470 = vunpack.c.l.b16 %v458
        %v471 = vunpack.c.l.b16 %v459
        %v472 = vpack.c.b16 %v469, %v468
        %v473 = vpack.c.b16 %v471, %v470
        %vm476 = vcmask 261120
        %v478 = vsel %vm476, %v455, 0
        %480 = vmatpush.bf16.msra.mxu0 0
        %481 = vmatpush.bf16.msra.mxu0 0
        %482 = vmatpush.bf16.msra.mxu0 0
        %483 = vmatpush.bf16.msra.mxu0 0
        %484 = vmatpush.bf16.msra.mxu0 0
        %485 = vmatpush.bf16.msra.mxu0 0
        %486 = vmatpush.bf16.msra.mxu0 %v473
        %487 = vmatpush.bf16.msra.mxu0 %v472
        %488 = vmatmul.bf16.gmra.mxu0 %v478
        %v489 = vpop.f32.mrf.mxu0
        %v490 = vadd.f32 %v462, %v489
        %v491 = vpop.f32.mrf.mxu0
        %492 = vdwg.mxu0
        %v493 = vpack.c.bf16 %v490, %v490
        %495 = vrot.lane.b32.xlu0 %v493, 120
        %v496 = vpop.permute.xlu0 %495
        %497 = vrot.lane.b32.xlu0 %v493, 112
        %v498 = vpop.permute.xlu0 %497
        %499 = vrot.lane.b32.xlu0 %v493, 104
        %v500 = vpop.permute.xlu0 %499
        %v501 = vunpack.c.l.b16 %v493
        %v502 = vpack.c.b16 %v501, %v501
        %503 = vrot.lane.b32.xlu0 %v502, 96
        %v504 = vpop.permute.xlu0 %503
        %vm505 = vcmask 64512
        %v507 = vsel %vm505, %v493, 0
        %v510 = vsel %vm505, %v504, 0
        %512 = vmatpush.bf16.xpose.msra.mxu0 0
        %513 = vmatpush.bf16.xpose.msra.mxu0 0
        %514 = vmatpush.bf16.xpose.msra.mxu0 0
        %515 = vmatpush.bf16.xpose.msra.mxu0 0
        %516 = vmatpush.bf16.xpose.msra.mxu0 0
        %517 = vmatpush.bf16.xpose.msra.mxu0 0
        %518 = vmatpush.bf16.xpose.msra.mxu0 0
        %519 = vmatpush.bf16.xpose.msra.mxu0 %v510
        %520 = vmatmul.bf16.gmra.mxu0 %v507
        %v521 = vpop.f32.mrf.mxu0
        %v522 = vadd.f32 0.0, %v521
        %v523 = vpop.f32.mrf.mxu0
        %524 = vdwg.mxu0
        %v525 = vunpack.c.l.b16 %v496
        %v526 = vpack.c.b16 %v525, %v525
        %527 = vrot.lane.b32.xlu0 %v526, 96
        %v528 = vpop.permute.xlu0 %527
        %v530 = vsel %vm505, %v496, 0
        %v533 = vsel %vm505, %v528, 0
        %535 = vmatpush.bf16.xpose.msra.mxu0 0
        %536 = vmatpush.bf16.xpose.msra.mxu0 0
        %537 = vmatpush.bf16.xpose.msra.mxu0 0
        %538 = vmatpush.bf16.xpose.msra.mxu0 0
        %539 = vmatpush.bf16.xpose.msra.mxu0 0
        %540 = vmatpush.bf16.xpose.msra.mxu0 0
        %541 = vmatpush.bf16.xpose.msra.mxu0 0
        %542 = vmatpush.bf16.xpose.msra.mxu0 %v533
        %543 = vmatmul.bf16.gmra.mxu0 %v530
        %v544 = vpop.f32.mrf.mxu0
        %v545 = vadd.f32 0.0, %v544
        %v546 = vpop.f32.mrf.mxu0
        %547 = vdwg.mxu0
        %v548 = vunpack.c.l.b16 %v498
        %v549 = vpack.c.b16 %v548, %v548
        %550 = vrot.lane.b32.xlu0 %v549, 96
        %v551 = vpop.permute.xlu0 %550
        %v553 = vsel %vm505, %v498, 0
        %v556 = vsel %vm505, %v551, 0
        %558 = vmatpush.bf16.xpose.msra.mxu0 0
        %559 = vmatpush.bf16.xpose.msra.mxu0 0
        %560 = vmatpush.bf16.xpose.msra.mxu0 0
        %561 = vmatpush.bf16.xpose.msra.mxu0 0
        %562 = vmatpush.bf16.xpose.msra.mxu0 0
        %563 = vmatpush.bf16.xpose.msra.mxu0 0
        %564 = vmatpush.bf16.xpose.msra.mxu0 0
        %565 = vmatpush.bf16.xpose.msra.mxu0 %v556
        %566 = vmatmul.bf16.gmra.mxu0 %v553
        %v567 = vpop.f32.mrf.mxu0
        %v568 = vadd.f32 0.0, %v567
        %v569 = vpop.f32.mrf.mxu0
        %570 = vdwg.mxu0
        %v571 = vunpack.c.l.b16 %v500
        %v572 = vpack.c.b16 %v571, %v571
        %573 = vrot.lane.b32.xlu0 %v572, 96
        %v574 = vpop.permute.xlu0 %573
        %v576 = vsel %vm505, %v500, 0
        %v579 = vsel %vm505, %v574, 0
        %581 = vmatpush.bf16.xpose.msra.mxu0 0
        %582 = vmatpush.bf16.xpose.msra.mxu0 0
        %583 = vmatpush.bf16.xpose.msra.mxu0 0
        %584 = vmatpush.bf16.xpose.msra.mxu0 0
        %585 = vmatpush.bf16.xpose.msra.mxu0 0
        %586 = vmatpush.bf16.xpose.msra.mxu0 0
        %587 = vmatpush.bf16.xpose.msra.mxu0 0
        %588 = vmatpush.bf16.xpose.msra.mxu0 %v579
        %589 = vmatmul.bf16.gmra.mxu0 %v576
        %v590 = vpop.f32.mrf.mxu0
        %v591 = vadd.f32 0.0, %v590
        %v592 = vpop.f32.mrf.mxu0
        %593 = vdwg.mxu0
        %v594 = vlaneseq
        %v595 = vshrl.u32 %v594, 7
        %v596 = vlaneseq
        %v597 = vand.u32 %v596, 127
        %vm598 = vcmp.gt.s32.totalorder %v597, %v595
        %v599 = vsel %vm598, 1, 0
        %vm600 = vcmp.eq.s32.totalorder %v599, 1
        %v601 = vsel %vm600, -1e+30, %v522
        %v602 = vsel %vm600, -1e+30, %v545
        %v603 = vsel %vm600, -1e+30, %v568
        %v604 = vsel %vm600, -1e+30, %v591
        %v605 = vsel %vm505, %v601, -inf
        %606 = vmax.xlane.f32.xlu0 %v605
        %v607 = vpop.xlane.xlu0 %606
        %v608 = vsel %vm505, %v602, -inf
        %609 = vmax.xlane.f32.xlu0 %v608
        %v610 = vpop.xlane.xlu0 %609
        %v611 = vsel %vm505, %v603, -inf
        %612 = vmax.xlane.f32.xlu0 %v611
        %v613 = vpop.xlane.xlu0 %612
        %v614 = vsel %vm505, %v604, -inf
        %615 = vmax.xlane.f32.xlu0 %v614
        %v616 = vpop.xlane.xlu0 %615
        %v617 = vsub.f32 %v601, %v607
        %v618 = vsub.f32 %v602, %v610
        %v619 = vsub.f32 %v603, %v613
        %v620 = vsub.f32 %v604, %v616
        %v621 = vmul.f32 %v617, 1.442695
        %v622 = vpow.pop %v621
        %v623 = vmul.f32 %v618, 1.442695
        %v624 = vpow.pop %v623
        %v625 = vmul.f32 %v619, 1.442695
        %v626 = vpow.pop %v625
        %v627 = vmul.f32 %v620, 1.442695
        %v628 = vpow.pop %v627
        %v629 = vsel %vm505, %v622, 0.0
        %630 = vadd.xlane.f32.xlu0 %v629
        %v631 = vpop.xlane.xlu0 %630
        %v632 = vsel %vm505, %v624, 0.0
        %633 = vadd.xlane.f32.xlu0 %v632
        %v634 = vpop.xlane.xlu0 %633
        %v635 = vsel %vm505, %v626, 0.0
        %636 = vadd.xlane.f32.xlu0 %v635
        %v637 = vpop.xlane.xlu0 %636
        %v638 = vsel %vm505, %v628, 0.0
        %639 = vadd.xlane.f32.xlu0 %v638
        %v640 = vpop.xlane.xlu0 %639
        %v641 = vrcp.pop %v631
        %v642 = vrcp.pop %v634
        %v643 = vrcp.pop %v637
        %v644 = vrcp.pop %v640
        %v645 = vmul.f32 %v622, %v641
        %v646 = vmul.f32 %v624, %v642
        %v647 = vmul.f32 %v626, %v643
        %v648 = vmul.f32 %v628, %v644
        %v649 = vpack.c.bf16 %v645, %v645
        %v650 = vpack.c.bf16 %v646, %v646
        %v651 = vpack.c.bf16 %v647, %v647
        %v652 = vpack.c.bf16 %v648, %v648
        %653 = vrot.lane.b32.xlu0 %v502, 64
        %v654 = vpop.permute.xlu0 %653
        %v656 = vsel %vm505, %v649, 0
        %vm658 = vcmask 1043456
        %v660 = vsel %vm658, %v654, 0
        %662 = vmatpush.bf16.msra.mxu0 0
        %663 = vmatpush.bf16.msra.mxu0 0
        %664 = vmatpush.bf16.msra.mxu0 0
        %665 = vmatpush.bf16.msra.mxu0 0
        %666 = vmatpush.bf16.msra.mxu0 0
        %667 = vmatpush.bf16.msra.mxu0 0
        %668 = vmatpush.bf16.msra.mxu0 0
        %669 = vmatpush.bf16.msra.mxu0 %v660
        %670 = vmatmul.bf16.gmra.mxu0 %v656
        %v671 = vpop.f32.mrf.mxu0
        %v672 = vadd.f32 0.0, %v671
        %v673 = vpop.f32.mrf.mxu0
        %674 = vdwg.mxu0
        %675 = vrot.lane.b32.xlu0 %v526, 64
        %v676 = vpop.permute.xlu0 %675
        %v678 = vsel %vm505, %v650, 0
        %v681 = vsel %vm658, %v676, 0
        %683 = vmatpush.bf16.msra.mxu0 0
        %684 = vmatpush.bf16.msra.mxu0 0
        %685 = vmatpush.bf16.msra.mxu0 0
        %686 = vmatpush.bf16.msra.mxu0 0
        %687 = vmatpush.bf16.msra.mxu0 0
        %688 = vmatpush.bf16.msra.mxu0 0
        %689 = vmatpush.bf16.msra.mxu0 0
        %690 = vmatpush.bf16.msra.mxu0 %v681
        %691 = vmatmul.bf16.gmra.mxu0 %v678
        %v692 = vpop.f32.mrf.mxu0
        %v693 = vadd.f32 0.0, %v692
        %v694 = vpop.f32.mrf.mxu0
        %695 = vdwg.mxu0
        %696 = vrot.lane.b32.xlu0 %v549, 64
        %v697 = vpop.permute.xlu0 %696
        %v699 = vsel %vm505, %v651, 0
        %v702 = vsel %vm658, %v697, 0
        %704 = vmatpush.bf16.msra.mxu0 0
        %705 = vmatpush.bf16.msra.mxu0 0
        %706 = vmatpush.bf16.msra.mxu0 0
        %707 = vmatpush.bf16.msra.mxu0 0
        %708 = vmatpush.bf16.msra.mxu0 0
        %709 = vmatpush.bf16.msra.mxu0 0
        %710 = vmatpush.bf16.msra.mxu0 0
        %711 = vmatpush.bf16.msra.mxu0 %v702
        %712 = vmatmul.bf16.gmra.mxu0 %v699
        %v713 = vpop.f32.mrf.mxu0
        %v714 = vadd.f32 0.0, %v713
        %v715 = vpop.f32.mrf.mxu0
        %716 = vdwg.mxu0
        %717 = vrot.lane.b32.xlu0 %v572, 64
        %v718 = vpop.permute.xlu0 %717
        %v720 = vsel %vm505, %v652, 0
        %v723 = vsel %vm658, %v718, 0
        %725 = vmatpush.bf16.msra.mxu0 0
        %726 = vmatpush.bf16.msra.mxu0 0
        %727 = vmatpush.bf16.msra.mxu0 0
        %728 = vmatpush.bf16.msra.mxu0 0
        %729 = vmatpush.bf16.msra.mxu0 0
        %730 = vmatpush.bf16.msra.mxu0 0
        %731 = vmatpush.bf16.msra.mxu0 0
        %732 = vmatpush.bf16.msra.mxu0 %v723
        %733 = vmatmul.bf16.gmra.mxu0 %v720
        %v734 = vpop.f32.mrf.mxu0
        %v735 = vadd.f32 0.0, %v734
        %v736 = vpop.f32.mrf.mxu0
        %737 = vdwg.mxu0
        %v738 = vpack.c.bf16 %v672, %v672
        %v739 = vpack.c.bf16 %v693, %v693
        %v740 = vpack.c.bf16 %v714, %v714
        %v741 = vpack.c.bf16 %v735, %v735
        %v743 = vunpack.c.l.b16 %v739
        %v744 = vpack.c.b16 %v743, %v743
        %745 = vrot.lane.b32.xlu0 %v744, 8
        %v746 = vpop.permute.xlu0 %745
        %v748 = vunpack.c.l.b16 %v740
        %v749 = vpack.c.b16 %v748, %v748
        %750 = vrot.lane.b32.xlu0 %v749, 16
        %v751 = vpop.permute.xlu0 %750
        %v753 = vunpack.c.l.b16 %v741
        %v754 = vpack.c.b16 %v753, %v753
        %755 = vrot.lane.b32.xlu0 %v754, 24
        %v756 = vpop.permute.xlu0 %755
        %v759 = vsel %vm505, %v738, %v746
        %vm760 = vcmask 130048
        %v762 = vsel %vm760, %v759, %v751
        %vm763 = vcmask 195584
        %v765 = vsel %vm763, %v762, %v756
        %v766 = vld [vmem:[%s3] sm:$0xf]
        %v767 = vld [vmem:[%s3 + $0x4] sm:$0xf]
        %v768 = vld [vmem:[%s3 + $0x8] sm:$0xf]
        %v769 = vld [vmem:[%s3 + $0xc] sm:$0xf]
        %v770 = vld [vmem:[%s4] sm:$0x1]
        %v772 = vperm.slane %v770, 0
        %v778 = vunpack.c.l.b16 %v766
        %v779 = vunpack.c.l.b16 %v767
        %v780 = vunpack.c.l.b16 %v768
        %v781 = vunpack.c.l.b16 %v769
        %v782 = vpack.c.b16 %v779, %v778
        %v783 = vpack.c.b16 %v781, %v780
        %v786 = vsel %vm476, %v765, 0
        %788 = vmatpush.bf16.msra.mxu0 0
        %789 = vmatpush.bf16.msra.mxu0 0
        %790 = vmatpush.bf16.msra.mxu0 0
        %791 = vmatpush.bf16.msra.mxu0 0
        %792 = vmatpush.bf16.msra.mxu0 0
        %793 = vmatpush.bf16.msra.mxu0 0
        %794 = vmatpush.bf16.msra.mxu0 %v783
        %795 = vmatpush.bf16.msra.mxu0 %v782
        %796 = vmatmul.bf16.gmra.mxu0 %v786
        %v797 = vpop.f32.mrf.mxu0
        %v798 = vadd.f32 %v772, %v797
        %v799 = vpop.f32.mrf.mxu0
        %800 = vdwg.mxu0
        %v801 = vadd.f32 %v454, %v798
        %v802 = vsel %vm476, %v801, 0.0
        %803 = vadd.xlane.f32.xlu0 %v802
        %v804 = vpop.xlane.xlu0 %803
        %v805 = vrcp.pop 32.0
        %v806 = vmul.f32 32.0, %v805
        %v807 = vsub.f32 1.0, %v806
        %v808 = vmul.f32 %v805, %v807
        %v809 = vadd.f32 %v805, %v808
        %vm810 = vweird.f32 %v805
        %v811 = vsel %vm810, %v805, %v809
        %v812 = vmul.f32 %v804, %v811
        %v813 = vmul.f32 %v801, %v801
        %v814 = vsel %vm476, %v813, 0.0
        %815 = vadd.xlane.f32.xlu0 %v814
        %v816 = vpop.xlane.xlu0 %815
        %v817 = vmul.f32 %v816, %v811
        %v818 = vmul.f32 %v812, %v812
        %v819 = vsub.f32 %v817, %v818
        %v820 = vsub.f32 %v801, %v812
        %v821 = vadd.f32 %v819, 1e-05
        %v822 = vrsqrt.pop %v821
        %v823 = vmul.f32 %v822, %v821
        %v824 = vmul.f32 %v823, %v822
        %v825 = vmul.f32 0.5, %v824
        %v826 = vsub.f32 1.5, %v825
        %v827 = vmul.f32 %v822, %v826
        %vm828 = vweird.f32 %v821
        %vm829 = vweird.f32 %v822
        %vm830 = vmor %vm828, %vm829
        %v831 = vsel %vm830, %v822, %v827
        %v832 = vmul.f32 %v820, %v831
        %v833 = vld [vmem:[%s5] sm:$0x1]
        %v835 = vperm.slane %v833, 0
        %v837 = vmul.f32 %v832, %v835
        %v838 = vld [vmem:[%s6] sm:$0x1]
        %v840 = vperm.slane %v838, 0
        %v842 = vadd.f32 %v837, %v840
        %v843 = vpack.c.bf16 %v842, %v842
        %v844 = vld [vmem:[#allocation2] sm:$0xf]
        %v845 = vld [vmem:[#allocation2 + $0x4] sm:$0xf]
        %v846 = vld [vmem:[#allocation2 + $0x8] sm:$0xf]
        %v847 = vld [vmem:[#allocation2 + $0xc] sm:$0xf]
        %v848 = vld [vmem:[%s8] sm:$0x1]
        %v850 = vperm.slane %v848, 0
        %v856 = vunpack.c.l.b16 %v844
        %v857 = vunpack.c.l.b16 %v845
        %v858 = vunpack.c.l.b16 %v846
        %v859 = vunpack.c.l.b16 %v847
        %v860 = vpack.c.b16 %v857, %v856
        %v861 = vpack.c.b16 %v859, %v858
        %v865 = vsel %vm476, %v843, 0
        %867 = vmatpush.bf16.msra.mxu0 0
        %868 = vmatpush.bf16.msra.mxu0 0
        %869 = vmatpush.bf16.msra.mxu0 0
        %870 = vmatpush.bf16.msra.mxu0 0
        %871 = vmatpush.bf16.msra.mxu0 0
        %872 = vmatpush.bf16.msra.mxu0 0
        %873 = vmatpush.bf16.msra.mxu0 %v861
        %874 = vmatpush.bf16.msra.mxu0 %v860
        %875 = vmatmul.bf16.gmra.mxu0 %v865
        %v876 = vpop.f32.mrf.mxu0
        %v877 = vadd.f32 %v850, %v876
        %v878 = vpop.f32.mrf.mxu0
        %879 = vdwg.mxu0
        %v880 = vmax.f32 %v877, 0.0
        %v881 = vpack.c.bf16 %v880, %v880
        %v882 = vld [vmem:[%s9] sm:$0xf]
        %v883 = vld [vmem:[%s9 + $0x4] sm:$0xf]
        %v884 = vld [vmem:[%s9 + $0x8] sm:$0xf]
        %v885 = vld [vmem:[%s9 + $0xc] sm:$0xf]
        %v886 = vld [vmem:[%s9 + $0x10] sm:$0xf]
        %v887 = vld [vmem:[%s9 + $0x14] sm:$0xf]
        %v888 = vld [vmem:[%s9 + $0x18] sm:$0xf]
        %v889 = vld [vmem:[%s9 + $0x1c] sm:$0xf]
        %v890 = vld [vmem:[%s10] sm:$0x1]
        %v892 = vperm.slane %v890, 0
        %v902 = vunpack.c.l.b16 %v882
        %v903 = vunpack.c.l.b16 %v883
        %v904 = vunpack.c.l.b16 %v884
        %v905 = vunpack.c.l.b16 %v885
        %v906 = vunpack.c.l.b16 %v886
        %v907 = vunpack.c.l.b16 %v887
        %v908 = vunpack.c.l.b16 %v888
        %v909 = vunpack.c.l.b16 %v889
        %v910 = vpack.c.b16 %v903, %v902
        %v911 = vpack.c.b16 %v905, %v904
        %v912 = vpack.c.b16 %v907, %v906
        %v913 = vpack.c.b16 %v909, %v908
        %vm918 = vcmask 523264
        %v920 = vsel %vm918, %v881, 0
        %922 = vmatpush.bf16.msra.mxu0 0
        %923 = vmatpush.bf16.msra.mxu0 0
        %924 = vmatpush.bf16.msra.mxu0 0
        %925 = vmatpush.bf16.msra.mxu0 0
        %926 = vmatpush.bf16.msra.mxu0 %v913
        %927 = vmatpush.bf16.msra.mxu0 %v912
        %928 = vmatpush.bf16.msra.mxu0 %v911
        %929 = vmatpush.bf16.msra.mxu0 %v910
        %930 = vmatmul.bf16.gmra.mxu0 %v920
        %v931 = vpop.f32.mrf.mxu0
        %v932 = vadd.f32 %v892, %v931
        %v933 = vpop.f32.mrf.mxu0
        %934 = vdwg.mxu0
        %v935 = vadd.f32 %v842, %v932
        %v936 = vsel %vm476, %v935, 0.0
        %937 = vadd.xlane.f32.xlu0 %v936
        %v938 = vpop.xlane.xlu0 %937
        %v939 = vmul.f32 %v938, %v811
        %v940 = vmul.f32 %v935, %v935
        %v941 = vsel %vm476, %v940, 0.0
        %942 = vadd.xlane.f32.xlu0 %v941
        %v943 = vpop.xlane.xlu0 %942
        %v944 = vmul.f32 %v943, %v811
        %v945 = vmul.f32 %v939, %v939
        %v946 = vsub.f32 %v944, %v945
        %v947 = vsub.f32 %v935, %v939
        %v948 = vadd.f32 %v946, 1e-05
        %v949 = vrsqrt.pop %v948
        %v950 = vmul.f32 %v949, %v948
        %v951 = vmul.f32 %v950, %v949
        %v952 = vmul.f32 0.5, %v951
        %v953 = vsub.f32 1.5, %v952
        %v954 = vmul.f32 %v949, %v953
        %vm955 = vweird.f32 %v948
        %vm956 = vweird.f32 %v949
        %vm957 = vmor %vm955, %vm956
        %v958 = vsel %vm957, %v949, %v954
        %v959 = vmul.f32 %v947, %v958
        %v960 = vld [vmem:[%s11] sm:$0x1]
        %v962 = vperm.slane %v960, 0
        %v964 = vmul.f32 %v959, %v962
        %v965 = vld [vmem:[%s12] sm:$0x1]
        %v967 = vperm.slane %v965, 0
        %v969 = vadd.f32 %v964, %v967
        %970 = vst.msk [vmem:[%s448] sm:$0xff] %vm476, %v969
        %s971 = sand.u32 %s314, 1
        %s972 = scalar_lea.sflag [#allocation4], %s971
        %s973 = sand.u32 %s314, 1
        %s974 = smul.addr %s973, 8
        %s975 = scalar_lea.vmem [#allocation5], %s974
        // Predicated region
        $region77: #{tpu_custom_call.1} parent=71 // pred_check
          %p976 = pneg %p324
        $region78: #{tpu_custom_call.1} parent=71 // pred_check_branch
          %978 = sbr.rel (%p976) target = $region80
        $region79: #{tpu_custom_call.1} parent=71 // pred_region
          %980 = vsyncadd %s972, 0
          %s981 = smul.addr %s28, 8
          %s982 = scalar_lea.hbm %s13, %s981
          %s984 = sshll.u32 %s975, 4
          %s985 = int_to_ptr.vmem [resolvable:$true] %s984
          %s986 = sshll.u32 %s982, 4
          %s987 = int_to_ptr.hbm [resolvable:$true] %s986
          %989 = dma.vmem_to_hbm [thread:$0]  %s985, 128, %s987, %s972
        $region80: #{tpu_custom_call.1} parent=71 // pred_fallthru
          _
      $region72: #{tpu_custom_call.1} parent=5 // pred_fallthru
        _
      %p990 = scmp.le.s32.totalorder 2, %s23
      // Predicated region
      $region81: #{tpu_custom_call.1} parent=5 // pred_check
        %p991 = pneg %p990
      $region82: #{tpu_custom_call.1} parent=5 // pred_check_branch
        %993 = sbr.rel (%p991) target = $region84
      $region83: #{tpu_custom_call.1} parent=5 // pred_region
        %s994 = ssub.s32 %s23, 2
        // Predicated region
        $region85: #{tpu_custom_call.1} parent=83 // pred_check
          %p995 = pneg %p330
        $region86: #{tpu_custom_call.1} parent=83 // pred_check_branch
          %997 = sbr.rel (%p995) target = $region88
        $region87: #{tpu_custom_call.1} parent=83 // pred_region
          %s998 = sand.u32 %s315, 1
          %s999 = scalar_lea.sflag [#allocation4], %s998
          %s1000 = sand.u32 %s315, 1
          %s1001 = smul.addr %s1000, 8
          %s1002 = scalar_lea.vmem [#allocation5], %s1001
          %1004 = dma.done %s999, 128
        $region88: #{tpu_custom_call.1} parent=83 // pred_fallthru
          _
      $region84: #{tpu_custom_call.1} parent=5 // pred_fallthru
        _
    $region6: #{tpu_custom_call.1} parent=1 // loop_footer
      %s27 = sadd.s32 1, %s23
    $region7: #{tpu_custom_call.1} parent=1 // loop_footer_branch
      %22 = sbr.rel target = $region3
    $region8: #{tpu_custom_call.1} parent=1 // loop_exit
      _
    %1005 = vsyncpa [#allocation3], 1
    %s1006 = scalar_lea.sflag [#allocation3], 1
    %1007 = vsyncpa %s1006, 1
    %1008 = vsyncpa [#allocation4], 1
    %s1009 = scalar_lea.sflag [#allocation4], 1
    %1010 = vsyncpa %s1009, 1

</llo_original>
